<compile_context>
chip_gen: v5e
topology: v5e:2x2
jax: 0.10.0
libtpu: 0.0.40
codegen_flags: <defaults>
</compile_context>

<pallas_src>
import jax
import jax.numpy as jnp
from jax.experimental import pallas as pl
from jax.experimental.pallas import tpu as pltpu


def _round_up(x: int, m: int) -> int:
    return ((x + m - 1) // m) * m


def _biased_gmf_kernel(idx_ref, tab_u_ref, tab_i_ref, o_ref):
    """One grid step handles tile_b samples (batch sits on the lane axis).

    idx_ref   : (2, TB)  int32   row 0 = user row id, row 1 = item row id
    tab_*_ref : (Da, R)  float32 augmented tables, feature-major (VMEM-resident)
    o_ref     : (1, TB)  float32 lane-dense output
    """
    n_rows = tab_u_ref.shape[1]
    tb = idx_ref.shape[1]

    u_idx = idx_ref[0:1, :]                                    # (1, TB)
    i_idx = idx_ref[1:2, :]                                    # (1, TB)

    # One-hot gather on the MXU; one-hot is (R, TB) so the gathered
    # activations and the output stay lane-dense (batch on lanes).
    row_ids = jax.lax.broadcasted_iota(jnp.int32, (n_rows, tb), 0)
    one = jnp.float32(1.0)
    zero = jnp.float32(0.0)
    oh_u = jnp.where(row_ids == u_idx, one, zero)              # (R, TB)
    oh_i = jnp.where(row_ids == i_idx, one, zero)              # (R, TB)

    ug = jnp.dot(tab_u_ref[...], oh_u,
                 preferred_element_type=jnp.float32,
                 precision=jax.lax.Precision.HIGHEST)          # (Da, TB)
    ig = jnp.dot(tab_i_ref[...], oh_i,
                 preferred_element_type=jnp.float32,
                 precision=jax.lax.Precision.HIGHEST)          # (Da, TB)

    # VPU multiply + sublane reduce.  Bias columns are folded into the tables,
    # so this single reduction yields dot + user_bias + item_bias.
    o_ref[...] = jnp.sum(ug * ig, axis=0, keepdims=True).astype(o_ref.dtype)


def biased_gmf_forward(x_batch, emb_table, bias_table, n_users, *, tile_b_cap=8192):
    """x_batch: (B, 2) int; emb_table: (n_users+n_items, D);
    bias_table: (n_users+n_items, 1). Returns (B,) float32."""
    assert tile_b_cap % 128 == 0, "tile_b_cap must be a multiple of 128"

    B = x_batch.shape[0]
    n_rows, D = emb_table.shape

    # tile_b: multiple of 128 lanes; aim for >= 4 grid steps (v7x megacore);
    # cap keeps per-step VMEM temporaries small on every generation.
    tile_b = max(128, min(tile_b_cap, _round_up(pl.cdiv(B, 4), 128)))
    padded_b = _round_up(B, tile_b)

    # ---- glue: index prep only (no embedding gather, no table transpose) ----
    u_idx = x_batch[:, 0].astype(jnp.int32)
    i_idx = x_batch[:, 1].astype(jnp.int32) + n_users          # MultiFeatureEmbedding offset
    idx = jnp.stack([u_idx, i_idx], axis=0)                    # (2, B), lane-contiguous
    if padded_b != B:
        idx = jnp.pad(idx, ((0, 0), (0, padded_b - B)))        # pad lanes -> row 0, sliced off

    # ---- augmented tables (tiny; built once per call; VMEM-resident) ----
    #   u_aug = [emb | bias | 1], i_aug = [emb | 1 | bias]
    #   => dot(u_aug[u], i_aug[i]) = emb_u . emb_i + bias_u + bias_i
    emb32 = emb_table.astype(jnp.float32)
    bias = bias_table.astype(jnp.float32).reshape(n_rows, 1)
    ones = jnp.ones((n_rows, 1), jnp.float32)
    tab_u = jnp.concatenate([emb32, bias, ones], axis=1)       # (n_rows, D + 2)
    tab_i = jnp.concatenate([emb32, ones, bias], axis=1)       # (n_rows, D + 2)
    d_aug = D + 2
    d_pad = _round_up(d_aug, 8)
    n_pad = _round_up(n_rows, 8)
    pad_spec = ((0, n_pad - n_rows), (0, d_pad - d_aug))
    tab_u_t = jnp.pad(tab_u, pad_spec).T                       # (d_pad, n_pad), feature-major
    tab_i_t = jnp.pad(tab_i, pad_spec).T                       # zero rows/cols contribute 0

    grid = (padded_b // tile_b,)

    out = pl.pallas_call(
        _biased_gmf_kernel,
        out_shape=jax.ShapeDtypeStruct((1, padded_b), jnp.float32),   # pinned f32
        grid_spec=pltpu.PrefetchScalarGridSpec(
            num_scalar_prefetch=0,
            grid=grid,
            in_specs=[
                pl.BlockSpec((2, tile_b), lambda b: (0, b)),        # streamed indices
                pl.BlockSpec((d_pad, n_pad), lambda b: (0, 0)),     # resident user-aug table
                pl.BlockSpec((d_pad, n_pad), lambda b: (0, 0)),     # resident item-aug table
            ],
            out_specs=pl.BlockSpec((1, tile_b), lambda b: (0, b)),  # lane-dense output
        ),
        compiler_params=pltpu.CompilerParams(
            dimension_semantics=("parallel",)),
    )(idx, tab_u_t, tab_i_t)

    return out[0, :B]                                          # (B,) float32


def _reference_forward(x_batch, emb_table, bias_table, n_users):
    u_idx = x_batch[:, 0]
    i_idx = x_batch[:, 1] + n_users
    u_emb = emb_table[u_idx]
    i_emb = emb_table[i_idx]
    dot = jnp.sum(u_emb * i_emb, axis=-1)
    return dot + bias_table[u_idx, 0] + bias_table[i_idx, 0]


if __name__ == "__main__":
    n_users = 16
    n_items = 24
    embedding_size = 32
    batch = 1000          # not a multiple of 128 -> exercises padding; grid = 4 steps

    key = jax.random.PRNGKey(0)
    k_emb, k_bias, k_u, k_i = jax.random.split(key, 4)

    # Deterministic synthetic parameters (no checkpoint load).
    emb_table = jax.random.normal(
        k_emb, (n_users + n_items, embedding_size), dtype=jnp.float32) * 0.1
    bias_table = jax.random.normal(
        k_bias, (n_users + n_items, 1), dtype=jnp.float32) * 0.1

    # x_batch: (B, 2) = [user_id, item_id]
    u_ids = jax.random.randint(k_u, (batch,), 0, n_users, dtype=jnp.int32)
    i_ids = jax.random.randint(k_i, (batch,), 0, n_items, dtype=jnp.int32)
    x_batch = jnp.stack([u_ids, i_ids], axis=1)

    out = biased_gmf_forward(x_batch, emb_table, bias_table, n_users)
    out = jax.block_until_ready(out)

    ref = _reference_forward(x_batch, emb_table, bias_table, n_users)
    assert out.shape == (batch,)
    assert out.dtype == jnp.float32
    assert jnp.allclose(out, ref, atol=1e-4, rtol=1e-4), (out, ref)

    print("KERNEL_OK")
</pallas_src>

<mosaic_0001>
module attributes {stable_mosaic.version = 11 : i64} {
  func.func @_biased_gmf_kernel(%arg0: i32, %arg1: memref<2x256xi32, #tpu.memory_space<vmem>>, %arg2: memref<40x40xf32, #tpu.memory_space<vmem>>, %arg3: memref<40x40xf32, #tpu.memory_space<vmem>>, %arg4: memref<1x256xf32, #tpu.memory_space<vmem>>) attributes {dimension_semantics = [#tpu.dimension_semantics<parallel>], iteration_bounds = array<i64: 4>, scalar_prefetch = 0 : i64, scratch_operands = 0 : i64, tpu.core_type = #tpu.core_type<tc>, window_params = [{transform_indices = @transform_0, window_bounds = array<i64: 2, 256>}, {pipeline_mode = #tpu.pipeline_mode<synchronous>, transform_indices = @transform_1, window_bounds = array<i64: 40, 40>}, {pipeline_mode = #tpu.pipeline_mode<synchronous>, transform_indices = @transform_2, window_bounds = array<i64: 40, 40>}, {transform_indices = @transform_3, window_bounds = array<i64: 1, 256>}]} {
    %c0 = arith.constant 0 : index
    %c0_0 = arith.constant 0 : index
    %0 = vector.load %arg1[%c0, %c0_0] : memref<2x256xi32, #tpu.memory_space<vmem>>, vector<1x256xi32>
    %c1 = arith.constant 1 : index
    %c0_1 = arith.constant 0 : index
    %1 = vector.load %arg1[%c1, %c0_1] : memref<2x256xi32, #tpu.memory_space<vmem>>, vector<1x256xi32>
    %2 = tpu.iota {dimensions = array<i32: 0>} : vector<40x256xi32>
    %3 = vector.broadcast %0 : vector<1x256xi32> to vector<40x256xi32>
    %4 = arith.cmpi eq, %2, %3 : vector<40x256xi32>
    %cst = arith.constant 1.000000e+00 : f32
    %cst_2 = arith.constant 0.000000e+00 : f32
    %5 = vector.broadcast %cst : f32 to vector<40x256xf32>
    %6 = vector.broadcast %cst_2 : f32 to vector<40x256xf32>
    %7 = arith.select %4, %5, %6 : vector<40x256xi1>, vector<40x256xf32>
    %8 = vector.broadcast %1 : vector<1x256xi32> to vector<40x256xi32>
    %9 = arith.cmpi eq, %2, %8 : vector<40x256xi32>
    %cst_3 = arith.constant 1.000000e+00 : f32
    %cst_4 = arith.constant 0.000000e+00 : f32
    %10 = vector.broadcast %cst_3 : f32 to vector<40x256xf32>
    %11 = vector.broadcast %cst_4 : f32 to vector<40x256xf32>
    %12 = arith.select %9, %10, %11 : vector<40x256xi1>, vector<40x256xf32>
    %c0_5 = arith.constant 0 : index
    %c0_6 = arith.constant 0 : index
    %13 = vector.load %arg2[%c0_5, %c0_6] : memref<40x40xf32, #tpu.memory_space<vmem>>, vector<40x40xf32>
    %cst_7 = arith.constant dense<0.000000e+00> : vector<40x256xf32>
    %14 = tpu.matmul %13, %7, %cst_7 {dimension_numbers = #tpu.dot_dimension_numbers<[1], [0], [0], [1], [0, 0, 1, 1], [], []>, precision = #tpu.contract_precision<fp32>} : vector<40x40xf32>, vector<40x256xf32>, vector<40x256xf32> -> vector<40x256xf32>
    %c0_8 = arith.constant 0 : index
    %c0_9 = arith.constant 0 : index
    %15 = vector.load %arg3[%c0_8, %c0_9] : memref<40x40xf32, #tpu.memory_space<vmem>>, vector<40x40xf32>
    %cst_10 = arith.constant dense<0.000000e+00> : vector<40x256xf32>
    %16 = tpu.matmul %15, %12, %cst_10 {dimension_numbers = #tpu.dot_dimension_numbers<[1], [0], [0], [1], [0, 0, 1, 1], [], []>, precision = #tpu.contract_precision<fp32>} : vector<40x40xf32>, vector<40x256xf32>, vector<40x256xf32> -> vector<40x256xf32>
    %17 = arith.mulf %14, %16 : vector<40x256xf32>
    %cst_11 = arith.constant dense<0.000000e+00> : vector<256xf32>
    %18 = vector.multi_reduction <add>, %17, %cst_11 [0] : vector<40x256xf32> to vector<256xf32>
    %19 = vector.shape_cast %18 : vector<256xf32> to vector<1x256xf32>
    %c0_12 = arith.constant 0 : index
    %c0_13 = arith.constant 0 : index
    %20 = vector.load %arg4[%c0_12, %c0_13] : memref<1x256xf32, #tpu.memory_space<vmem>>, vector<1x256xf32>
    tpu.vector_store %arg4[%c0_12, %c0_13], %19 {strides = array<i32>} : memref<1x256xf32, #tpu.memory_space<vmem>>, vector<1x256xf32>,
    return
  }
  func.func @transform_0(%arg0: i32) -> (i32, i32) {
    %c0_i32 = arith.constant 0 : i32
    %c0_i32_0 = arith.constant 0 : i32
    return %c0_i32, %arg0 : i32, i32
  }
  func.func @transform_1(%arg0: i32) -> (i32, i32) {
    %c0_i32 = arith.constant 0 : i32
    %c0_i32_0 = arith.constant 0 : i32
    %c0_i32_1 = arith.constant 0 : i32
    return %c0_i32, %c0_i32_0 : i32, i32
  }
  func.func @transform_2(%arg0: i32) -> (i32, i32) {
    %c0_i32 = arith.constant 0 : i32
    %c0_i32_0 = arith.constant 0 : i32
    %c0_i32_1 = arith.constant 0 : i32
    return %c0_i32, %c0_i32_0 : i32, i32
  }
  func.func @transform_3(%arg0: i32) -> (i32, i32) {
    %c0_i32 = arith.constant 0 : i32
    %c0_i32_0 = arith.constant 0 : i32
    return %c0_i32, %arg0 : i32, i32
  }
}

</mosaic_0001>

<llo_original>
// kernel: tpu_custom_call.1
$region0: #{tpu_custom_call.1}
  #allocation0 [shape = 'u32[]', space=smem, size = 0x4, offset = 0x4, fixed_abs, tag = 'smem constant byte address 0x4 - core index']
  #allocation1 [shape = 'u32[72,128]{1,0:T(1,128)}', space=vmem, size = 0x9000, scoped, tag = 'internal scratch']
  %s0 = inlined_call_operand.hbm [shape: s32[2,1024], index: 0, kind: input, shape index: {}]
  %s1 = inlined_call_operand.hbm [shape: f32[40,40], index: 1, kind: input, shape index: {}]
  %s2 = inlined_call_operand.hbm [shape: f32[40,40], index: 2, kind: input, shape index: {}]
  %s3 = inlined_call_operand.hbm [shape: f32[1,1024], index: 3, kind: output, shape index: {}]
  %s4 = sld [smem:[#allocation0]]
  $region57: #{tpu_custom_call.1} parent=0
    _
  %s6 = ssub.s32 1, %s4
  %s7 = scalar_select 0, %s6, %s4
  $region1: #{tpu_custom_call.1} parent=0
    #allocation2 [shape = 'u8[4096]{0}', space=vmem, size = 0x1000, scoped, tag = 'input window, operand 0']
    #allocation3 [shape = 's32[2]{0}', space=sflag, size = 0x8, scoped, tag = 'scoped memory for tpu_custom_call.1']
    #allocation4 [shape = 's32[2]{0}', space=sflag, size = 0x8, scoped, tag = 'scoped memory for tpu_custom_call.1']
    #allocation5 [shape = 'u8[20480]{0}', space=vmem, size = 0x5000, scoped, tag = 'input window, operand 1, single buffered']
    #allocation6 [shape = 's32[1]{0}', space=sflag, size = 0x4, scoped, tag = 'scoped memory for tpu_custom_call.1']
    #allocation7 [shape = 'u8[20480]{0}', space=vmem, size = 0x5000, scoped, tag = 'input window, operand 2, single buffered']
    #allocation8 [shape = 'u8[2048]{0}', space=vmem, size = 0x800, scoped, tag = 'output window, operand 0']
    %8 = vsyncpa [#allocation3], 0
    %s9 = scalar_lea.sflag [#allocation3], 1
    %10 = vsyncpa %s9, 0
    %11 = vsyncpa [#allocation6], 0
    %12 = vsyncpa [#allocation4], 0
    %s13 = scalar_lea.sflag [#allocation4], 1
    %14 = vsyncpa %s13, 0
    loop: start=0, step=1, limit=6
    $region2: #{tpu_custom_call.1} parent=1 // loop_pre_header
      _
    $region3: #{tpu_custom_call.1} parent=1 // loop_header
      %s16 = sphi 0, %s20
      %p17 = scmp.ge.s32.totalorder %s16, 6
      %s26 = sphi 0, %s28
      %s29 = sphi 0, %s26
      %s30 = sphi 0, %s29
      %s46 = sphi 0, %s30
      %s50 = sphi 0, %s50
      %s52 = sphi 0, %s50
      %s53 = sphi 0, %s52
      %s67 = sphi 0, %s53
      %s71 = sphi 0, %s71
      %s73 = sphi 0, %s71
      %s74 = sphi 0, %s73
      %s88 = sphi 0, %s74
      %s94 = sphi 0, %s96
      %s97 = sphi 0, %s94
      %s98 = sphi 0, %s97
      %s114 = sphi 0, %s98
    $region4: #{tpu_custom_call.1} parent=1 // loop_header_branch
      %19 = sbr.rel (%p17) target = $region8
    $region5: #{tpu_custom_call.1} parent=1 // loop_body
      %s21 = ssub.s32 %s16, 1
      %s22 = ssub.s32 %s16, 2
      %s23 = sadd.s32 %s16, 1
      %s24 = ssub.s32 %s16, %s23
      %p25 = scmp.eq.s32.totalorder %s24, 0
      %s27 = sadd.s32 %s26, 1
      %s28 = scalar_select %p25, %s26, %s27
      %p31 = pneg %p25
      %p32 = scmp.eq.s32.totalorder %s16, 3
      %p33 = por %p31, %p32
      %p34 = scmp.ne.s32.totalorder %s26, %s29
      %p35 = scmp.eq.s32.totalorder %s16, 0
      %p36 = por %p34, %p35
      %p37 = scmp.ne.s32.totalorder %s26, %s29
      %p38 = scmp.eq.s32.totalorder %s21, 3
      %p39 = por %p37, %p38
      %p40 = scmp.ne.s32.totalorder %s29, %s30
      %p41 = scmp.eq.s32.totalorder %s21, 0
      %p42 = por %p40, %p41
      %p43 = scmp.ne.s32.totalorder %s29, %s30
      %p44 = scmp.eq.s32.totalorder %s22, 3
      %p45 = por %p43, %p44
      %p47 = scmp.ne.s32.totalorder %s30, %s46
      %p48 = scmp.eq.s32.totalorder %s22, 0
      %p49 = por %p47, %p48
      %s51 = sadd.s32 %s50, 1
      %p54 = scmp.eq.s32.totalorder %s16, 3
      %p55 = scmp.ne.s32.totalorder %s50, %s52
      %p56 = scmp.eq.s32.totalorder %s16, 0
      %p57 = por %p55, %p56
      %p58 = scmp.ne.s32.totalorder %s50, %s52
      %p59 = scmp.eq.s32.totalorder %s21, 3
      %p60 = por %p58, %p59
      %p61 = scmp.ne.s32.totalorder %s52, %s53
      %p62 = scmp.eq.s32.totalorder %s21, 0
      %p63 = por %p61, %p62
      %p64 = scmp.ne.s32.totalorder %s52, %s53
      %p65 = scmp.eq.s32.totalorder %s22, 3
      %p66 = por %p64, %p65
      %p68 = scmp.ne.s32.totalorder %s53, %s67
      %p69 = scmp.eq.s32.totalorder %s22, 0
      %p70 = por %p68, %p69
      %s72 = sadd.s32 %s71, 1
      %p75 = scmp.eq.s32.totalorder %s16, 3
      %p76 = scmp.ne.s32.totalorder %s71, %s73
      %p77 = scmp.eq.s32.totalorder %s16, 0
      %p78 = por %p76, %p77
      %p79 = scmp.ne.s32.totalorder %s71, %s73
      %p80 = scmp.eq.s32.totalorder %s21, 3
      %p81 = por %p79, %p80
      %p82 = scmp.ne.s32.totalorder %s73, %s74
      %p83 = scmp.eq.s32.totalorder %s21, 0
      %p84 = por %p82, %p83
      %p85 = scmp.ne.s32.totalorder %s73, %s74
      %p86 = scmp.eq.s32.totalorder %s22, 3
      %p87 = por %p85, %p86
      %p89 = scmp.ne.s32.totalorder %s74, %s88
      %p90 = scmp.eq.s32.totalorder %s22, 0
      %p91 = por %p89, %p90
      %s92 = ssub.s32 %s16, %s23
      %p93 = scmp.eq.s32.totalorder %s92, 0
      %s95 = sadd.s32 %s94, 1
      %s96 = scalar_select %p93, %s94, %s95
      %p99 = pneg %p93
      %p100 = scmp.eq.s32.totalorder %s16, 3
      %p101 = por %p99, %p100
      %p102 = scmp.ne.s32.totalorder %s94, %s97
      %p103 = scmp.eq.s32.totalorder %s16, 0
      %p104 = por %p102, %p103
      %p105 = scmp.ne.s32.totalorder %s94, %s97
      %p106 = scmp.eq.s32.totalorder %s21, 3
      %p107 = por %p105, %p106
      %p108 = scmp.ne.s32.totalorder %s97, %s98
      %p109 = scmp.eq.s32.totalorder %s21, 0
      %p110 = por %p108, %p109
      %p111 = scmp.ne.s32.totalorder %s97, %s98
      %p112 = scmp.eq.s32.totalorder %s22, 3
      %p113 = por %p111, %p112
      %p115 = scmp.ne.s32.totalorder %s98, %s114
      %p116 = scmp.eq.s32.totalorder %s22, 0
      %p117 = por %p115, %p116
      %p118 = scmp.le.s32.totalorder 1, %s16
      %p119 = scmp.lt.s32.totalorder %s16, 5
      %p120 = pnand %p118, %p119
      %p121 = pneg %p120
      // Predicated region
      $region9: #{tpu_custom_call.1} parent=5 // pred_check
        _
      $region10: #{tpu_custom_call.1} parent=5 // pred_check_branch
        %123 = sbr.rel (%p120) target = $region12
      $region11: #{tpu_custom_call.1} parent=5 // pred_region
        %s124 = ssub.s32 %s16, 1
        // Predicated region
        $region13: #{tpu_custom_call.1} parent=11 // pred_check
          %p125 = pneg %p63
        $region14: #{tpu_custom_call.1} parent=11 // pred_check_branch
          %127 = sbr.rel (%p125) target = $region16
        $region15: #{tpu_custom_call.1} parent=11 // pred_region
          %129 = vsyncadd [#allocation6], 0
          %s130 = sshll.u32 %s1, 4
          %s131 = int_to_ptr.hbm [resolvable:$true] %s130
          %s132 = sshll.u32 [#allocation5], 4
          %s133 = int_to_ptr.vmem [resolvable:$true] %s132
          %138 = dma.hbm_to_vmem [thread:$0]  %s131, 640, %s133, [#allocation6], 128, 128, 8
        $region16: #{tpu_custom_call.1} parent=11 // pred_fallthru
          _
        // Predicated region
        $region17: #{tpu_custom_call.1} parent=11 // pred_check
          %p139 = pneg %p84
        $region18: #{tpu_custom_call.1} parent=11 // pred_check_branch
          %141 = sbr.rel (%p139) target = $region20
        $region19: #{tpu_custom_call.1} parent=11 // pred_region
          %143 = vsyncadd [#allocation6], 0
          %s144 = sshll.u32 %s2, 4
          %s145 = int_to_ptr.hbm [resolvable:$true] %s144
          %s146 = sshll.u32 [#allocation7], 4
          %s147 = int_to_ptr.vmem [resolvable:$true] %s146
          %152 = dma.hbm_to_vmem [thread:$0]  %s145, 640, %s147, [#allocation6], 128, 128, 8
        $region20: #{tpu_custom_call.1} parent=11 // pred_fallthru
          _
      $region12: #{tpu_custom_call.1} parent=5 // pred_fallthru
        _
      %p153 = scmp.lt.s32.totalorder %s16, 4
      // Predicated region
      $region21: #{tpu_custom_call.1} parent=5 // pred_check
        %p154 = pneg %p153
      $region22: #{tpu_custom_call.1} parent=5 // pred_check_branch
        %156 = sbr.rel (%p154) target = $region24
      $region23: #{tpu_custom_call.1} parent=5 // pred_region
        // Predicated region
        $region25: #{tpu_custom_call.1} parent=23 // pred_check
          %p157 = pneg %p36
        $region26: #{tpu_custom_call.1} parent=23 // pred_check_branch
          %159 = sbr.rel (%p157) target = $region28
        $region27: #{tpu_custom_call.1} parent=23 // pred_region
          %s160 = sand.u32 %s26, 1
          %s161 = scalar_lea.sflag [#allocation3], %s160
          %s162 = sand.u32 %s26, 1
          %s163 = smul.addr %s162, 4
          %s164 = scalar_lea.vmem [#allocation2], %s163
          %s165 = smul.u32 2, %s16
          %167 = vsyncadd %s161, 0
          %s168 = smul.addr %s165, 2
          %s169 = scalar_lea.hbm %s0, %s168
          %s171 = sshll.u32 %s169, 4
          %s172 = int_to_ptr.hbm [resolvable:$true] %s171
          %s173 = sshll.u32 %s164, 4
          %s174 = int_to_ptr.vmem [resolvable:$true] %s173
          %176 = dma.hbm_to_vmem [thread:$0]  %s172, 64, %s174, %s161
        $region28: #{tpu_custom_call.1} parent=23 // pred_fallthru
          _
      $region24: #{tpu_custom_call.1} parent=5 // pred_fallthru
        _
      %p177 = scmp.le.s32.totalorder 1, %s16
      %p178 = scmp.lt.s32.totalorder %s16, 5
      %p179 = pnand %p177, %p178
      %p180 = pneg %p179
      // Predicated region
      $region29: #{tpu_custom_call.1} parent=5 // pred_check
        _
      $region30: #{tpu_custom_call.1} parent=5 // pred_check_branch
        %182 = sbr.rel (%p179) target = $region32
      $region31: #{tpu_custom_call.1} parent=5 // pred_region
        %s183 = ssub.s32 %s16, 1
        %s184 = sand.u32 %s29, 1
        %s185 = scalar_lea.sflag [#allocation3], %s184
        %s186 = sand.u32 %s29, 1
        %s187 = smul.addr %s186, 4
        %s188 = scalar_lea.vmem [#allocation2], %s187
        // Predicated region
        $region33: #{tpu_custom_call.1} parent=31 // pred_check
          %p189 = pneg %p42
        $region34: #{tpu_custom_call.1} parent=31 // pred_check_branch
          %191 = sbr.rel (%p189) target = $region36
        $region35: #{tpu_custom_call.1} parent=31 // pred_region
          %193 = dma.done %s185, 64
        $region36: #{tpu_custom_call.1} parent=31 // pred_fallthru
          _
        // Predicated region
        $region37: #{tpu_custom_call.1} parent=31 // pred_check
          %p194 = pneg %p63
        $region38: #{tpu_custom_call.1} parent=31 // pred_check_branch
          %196 = sbr.rel (%p194) target = $region40
        $region39: #{tpu_custom_call.1} parent=31 // pred_region
          %198 = dma.done [#allocation6], 640
        $region40: #{tpu_custom_call.1} parent=31 // pred_fallthru
          _
        // Predicated region
        $region41: #{tpu_custom_call.1} parent=31 // pred_check
          %p199 = pneg %p84
        $region42: #{tpu_custom_call.1} parent=31 // pred_check_branch
          %201 = sbr.rel (%p199) target = $region44
        $region43: #{tpu_custom_call.1} parent=31 // pred_region
          %203 = dma.done [#allocation6], 640
        $region44: #{tpu_custom_call.1} parent=31 // pred_fallthru
          _
        %s204 = sand.u32 %s29, 1
        %s205 = scalar_lea.sflag [#allocation3], %s204
        %s206 = sand.u32 %s29, 1
        %s207 = smul.addr %s206, 4
        %s208 = scalar_lea.vmem [#allocation2], %s207
        %p209 = pneg %p42
        %p210 = pneg %p39
        %p211 = pneg %p63
        %p212 = pneg %p60
        %p213 = pneg %p84
        %p214 = pneg %p81
        %p215 = pneg %p110
        %p216 = pneg %p107
        %s217 = sand.u32 %s97, 1
        %s218 = scalar_lea.sflag [#allocation4], %s217
        %s219 = sand.u32 %s97, 1
        %s220 = smul.addr %s219, 2
        %s221 = scalar_lea.vmem [#allocation8], %s220
        %s222 = smul.u32 2, %s21
        %s223 = smul.u32 2, %s21
        %v224 = vld [vmem:[%s188] ss:$2 sm:$0x3]
        %s225 = scalar_lea.vmem %s188, 1 [#allocation2]
        %v226 = vld [vmem:[%s225] ss:$2 sm:$0x3]
        %v227 = vlaneseq
        %v228 = vshrl.u32 %v227, 7
        %v229 = vadd.s32 %v228, 8
        %v230 = vadd.s32 %v228, 16
        %v231 = vadd.s32 %v228, 24
        %v232 = vadd.s32 %v228, 32
        %v233 = vperm.slane %v224, 0
        %v234 = vperm.slane %v224, 1
        %vm235 = vcmp.eq.s32.totalorder %v228, %v233
        %vm236 = vcmp.eq.s32.totalorder %v228, %v234
        %vm237 = vcmp.eq.s32.totalorder %v229, %v233
        %vm238 = vcmp.eq.s32.totalorder %v229, %v234
        %vm239 = vcmp.eq.s32.totalorder %v230, %v233
        %vm240 = vcmp.eq.s32.totalorder %v230, %v234
        %vm241 = vcmp.eq.s32.totalorder %v231, %v233
        %vm242 = vcmp.eq.s32.totalorder %v231, %v234
        %vm243 = vcmp.eq.s32.totalorder %v232, %v233
        %vm244 = vcmp.eq.s32.totalorder %v232, %v234
        %v245 = vsel %vm235, 1.0, 0.0
        %v246 = vsel %vm236, 1.0, 0.0
        %v247 = vsel %vm237, 1.0, 0.0
        %v248 = vsel %vm238, 1.0, 0.0
        %v249 = vsel %vm239, 1.0, 0.0
        %v250 = vsel %vm240, 1.0, 0.0
        %v251 = vsel %vm241, 1.0, 0.0
        %v252 = vsel %vm242, 1.0, 0.0
        %v253 = vsel %vm243, 1.0, 0.0
        %v254 = vsel %vm244, 1.0, 0.0
        %v255 = vperm.slane %v226, 0
        %v256 = vperm.slane %v226, 1
        %vm257 = vcmp.eq.s32.totalorder %v228, %v255
        %vm258 = vcmp.eq.s32.totalorder %v228, %v256
        %vm259 = vcmp.eq.s32.totalorder %v229, %v255
        %vm260 = vcmp.eq.s32.totalorder %v229, %v256
        %vm261 = vcmp.eq.s32.totalorder %v230, %v255
        %vm262 = vcmp.eq.s32.totalorder %v230, %v256
        %vm263 = vcmp.eq.s32.totalorder %v231, %v255
        %vm264 = vcmp.eq.s32.totalorder %v231, %v256
        %vm265 = vcmp.eq.s32.totalorder %v232, %v255
        %vm266 = vcmp.eq.s32.totalorder %v232, %v256
        %v267 = vsel %vm257, 1.0, 0.0
        %v268 = vsel %vm258, 1.0, 0.0
        %v269 = vsel %vm259, 1.0, 0.0
        %v270 = vsel %vm260, 1.0, 0.0
        %v271 = vsel %vm261, 1.0, 0.0
        %v272 = vsel %vm262, 1.0, 0.0
        %v273 = vsel %vm263, 1.0, 0.0
        %v274 = vsel %vm264, 1.0, 0.0
        %v275 = vsel %vm265, 1.0, 0.0
        %v276 = vsel %vm266, 1.0, 0.0
        %v277 = vld [vmem:[#allocation5] sm:$0xff]
        %v278 = vld [vmem:[#allocation5 + $0x8] sm:$0xff]
        %v279 = vld [vmem:[#allocation5 + $0x10] sm:$0xff]
        %v280 = vld [vmem:[#allocation5 + $0x18] sm:$0xff]
        %v281 = vld [vmem:[#allocation5 + $0x20] sm:$0xff]
        %vm282 = vcmask 326656
        %v284 = vsel %vm282, %v277, 0
        %v287 = vsel %vm282, %v278, 0
        %v290 = vsel %vm282, %v279, 0
        %v293 = vsel %vm282, %v280, 0
        %v296 = vsel %vm282, %v281, 0
        %298 = vmatpush.msra.mxu0 0.0
        %299 = vmatpush.msra.mxu0 0.0
        %300 = vmatpush.msra.mxu0 0.0
        %301 = vmatpush.msra.mxu0 0.0
        %302 = vmatpush.msra.mxu0 0.0
        %303 = vmatpush.msra.mxu0 0.0
        %304 = vmatpush.msra.mxu0 0.0
        %305 = vmatpush.msra.mxu0 0.0
        %306 = vmatpush.msra.mxu0 0.0
        %307 = vmatpush.msra.mxu0 0.0
        %308 = vmatpush.msra.mxu0 0.0
        %309 = vmatpush.msra.mxu0 %v253
        %310 = vmatpush.msra.mxu0 %v251
        %311 = vmatpush.msra.mxu0 %v249
        %312 = vmatpush.msra.mxu0 %v247
        %313 = vmatpush.msra.mxu0 %v245
        %v314 = vand.u32 %v284, 4294901760
        %v315 = vsub.f32 %v284, %v314
        %v316 = vand.u32 %v315, 4294901760
        %v317 = vsub.f32 %v315, %v316
        %v318 = vand.u32 %v317, 4294901760
        %319 = vmatmul.f32.gmra.mxu0 %v318
        %v320 = vpop.f32.mrf.mxu0
        %v321 = vadd.f32 0.0, %v320
        %v322 = vand.u32 %v287, 4294901760
        %v323 = vsub.f32 %v287, %v322
        %v324 = vand.u32 %v323, 4294901760
        %v325 = vsub.f32 %v323, %v324
        %v326 = vand.u32 %v325, 4294901760
        %327 = vmatmul.f32.gmra.mxu0 %v326
        %v328 = vpop.f32.mrf.mxu0
        %v329 = vadd.f32 0.0, %v328
        %v330 = vand.u32 %v290, 4294901760
        %v331 = vsub.f32 %v290, %v330
        %v332 = vand.u32 %v331, 4294901760
        %v333 = vsub.f32 %v331, %v332
        %v334 = vand.u32 %v333, 4294901760
        %335 = vmatmul.f32.gmra.mxu0 %v334
        %v336 = vpop.f32.mrf.mxu0
        %v337 = vadd.f32 0.0, %v336
        %v338 = vand.u32 %v293, 4294901760
        %v339 = vsub.f32 %v293, %v338
        %v340 = vand.u32 %v339, 4294901760
        %v341 = vsub.f32 %v339, %v340
        %v342 = vand.u32 %v341, 4294901760
        %343 = vmatmul.f32.gmra.mxu0 %v342
        %v344 = vpop.f32.mrf.mxu0
        %v345 = vadd.f32 0.0, %v344
        %v346 = vand.u32 %v296, 4294901760
        %v347 = vsub.f32 %v296, %v346
        %v348 = vand.u32 %v347, 4294901760
        %v349 = vsub.f32 %v347, %v348
        %v350 = vand.u32 %v349, 4294901760
        %351 = vmatmul.f32.gmra.mxu0 %v350
        %v352 = vpop.f32.mrf.mxu0
        %v353 = vadd.f32 0.0, %v352
        %354 = vdwg.mxu0
        %355 = vmatpush.msra.mxu0 0.0
        %356 = vmatpush.msra.mxu0 0.0
        %357 = vmatpush.msra.mxu0 0.0
        %358 = vmatpush.msra.mxu0 0.0
        %359 = vmatpush.msra.mxu0 0.0
        %360 = vmatpush.msra.mxu0 0.0
        %361 = vmatpush.msra.mxu0 0.0
        %362 = vmatpush.msra.mxu0 0.0
        %363 = vmatpush.msra.mxu0 0.0
        %364 = vmatpush.msra.mxu0 0.0
        %365 = vmatpush.msra.mxu0 0.0
        %v366 = vsub.f32 %v253, %v253
        %v367 = vand.u32 %v366, 4294901760
        %v368 = vsub.f32 %v366, %v367
        %v369 = vand.u32 %v368, 4294901760
        %370 = vmatpush.msra.mxu0 %v369
        %v371 = vsub.f32 %v251, %v251
        %v372 = vand.u32 %v371, 4294901760
        %v373 = vsub.f32 %v371, %v372
        %v374 = vand.u32 %v373, 4294901760
        %375 = vmatpush.msra.mxu0 %v374
        %v376 = vsub.f32 %v249, %v249
        %v377 = vand.u32 %v376, 4294901760
        %v378 = vsub.f32 %v376, %v377
        %v379 = vand.u32 %v378, 4294901760
        %380 = vmatpush.msra.mxu0 %v379
        %v381 = vsub.f32 %v247, %v247
        %v382 = vand.u32 %v381, 4294901760
        %v383 = vsub.f32 %v381, %v382
        %v384 = vand.u32 %v383, 4294901760
        %385 = vmatpush.msra.mxu0 %v384
        %v386 = vsub.f32 %v245, %v245
        %v387 = vand.u32 %v386, 4294901760
        %v388 = vsub.f32 %v386, %v387
        %v389 = vand.u32 %v388, 4294901760
        %390 = vmatpush.msra.mxu0 %v389
        %v391 = vand.u32 %v284, 4294901760
        %392 = vmatmul.f32.gmra.mxu0 %v391
        %v393 = vpop.f32.mrf.mxu0
        %v394 = vadd.f32 %v321, %v393
        %v395 = vand.u32 %v287, 4294901760
        %396 = vmatmul.f32.gmra.mxu0 %v395
        %v397 = vpop.f32.mrf.mxu0
        %v398 = vadd.f32 %v329, %v397
        %v399 = vand.u32 %v290, 4294901760
        %400 = vmatmul.f32.gmra.mxu0 %v399
        %v401 = vpop.f32.mrf.mxu0
        %v402 = vadd.f32 %v337, %v401
        %v403 = vand.u32 %v293, 4294901760
        %404 = vmatmul.f32.gmra.mxu0 %v403
        %v405 = vpop.f32.mrf.mxu0
        %v406 = vadd.f32 %v345, %v405
        %v407 = vand.u32 %v296, 4294901760
        %408 = vmatmul.f32.gmra.mxu0 %v407
        %v409 = vpop.f32.mrf.mxu0
        %v410 = vadd.f32 %v353, %v409
        %411 = vdwg.mxu0
        %412 = vmatpush.msra.mxu0 0.0
        %413 = vmatpush.msra.mxu0 0.0
        %414 = vmatpush.msra.mxu0 0.0
        %415 = vmatpush.msra.mxu0 0.0
        %416 = vmatpush.msra.mxu0 0.0
        %417 = vmatpush.msra.mxu0 0.0
        %418 = vmatpush.msra.mxu0 0.0
        %419 = vmatpush.msra.mxu0 0.0
        %420 = vmatpush.msra.mxu0 0.0
        %421 = vmatpush.msra.mxu0 0.0
        %422 = vmatpush.msra.mxu0 0.0
        %v423 = vsub.f32 %v253, %v253
        %424 = vmatpush.msra.mxu0 %v423
        %v425 = vsub.f32 %v251, %v251
        %426 = vmatpush.msra.mxu0 %v425
        %v427 = vsub.f32 %v249, %v249
        %428 = vmatpush.msra.mxu0 %v427
        %v429 = vsub.f32 %v247, %v247
        %430 = vmatpush.msra.mxu0 %v429
        %v431 = vsub.f32 %v245, %v245
        %432 = vmatpush.msra.mxu0 %v431
        %v433 = vand.u32 %v284, 4294901760
        %v434 = vsub.f32 %v284, %v433
        %435 = vmatmul.f32.gmra.mxu0 %v434
        %v436 = vpop.f32.mrf.mxu0
        %v437 = vadd.f32 %v394, %v436
        %v438 = vand.u32 %v287, 4294901760
        %v439 = vsub.f32 %v287, %v438
        %440 = vmatmul.f32.gmra.mxu0 %v439
        %v441 = vpop.f32.mrf.mxu0
        %v442 = vadd.f32 %v398, %v441
        %v443 = vand.u32 %v290, 4294901760
        %v444 = vsub.f32 %v290, %v443
        %445 = vmatmul.f32.gmra.mxu0 %v444
        %v446 = vpop.f32.mrf.mxu0
        %v447 = vadd.f32 %v402, %v446
        %v448 = vand.u32 %v293, 4294901760
        %v449 = vsub.f32 %v293, %v448
        %450 = vmatmul.f32.gmra.mxu0 %v449
        %v451 = vpop.f32.mrf.mxu0
        %v452 = vadd.f32 %v406, %v451
        %v453 = vand.u32 %v296, 4294901760
        %v454 = vsub.f32 %v296, %v453
        %455 = vmatmul.f32.gmra.mxu0 %v454
        %v456 = vpop.f32.mrf.mxu0
        %v457 = vadd.f32 %v410, %v456
        %458 = vdwg.mxu0
        %459 = vmatpush.msra.mxu0 0.0
        %460 = vmatpush.msra.mxu0 0.0
        %461 = vmatpush.msra.mxu0 0.0
        %462 = vmatpush.msra.mxu0 0.0
        %463 = vmatpush.msra.mxu0 0.0
        %464 = vmatpush.msra.mxu0 0.0
        %465 = vmatpush.msra.mxu0 0.0
        %466 = vmatpush.msra.mxu0 0.0
        %467 = vmatpush.msra.mxu0 0.0
        %468 = vmatpush.msra.mxu0 0.0
        %469 = vmatpush.msra.mxu0 0.0
        %470 = vmatpush.msra.mxu0 %v253
        %471 = vmatpush.msra.mxu0 %v251
        %472 = vmatpush.msra.mxu0 %v249
        %473 = vmatpush.msra.mxu0 %v247
        %474 = vmatpush.msra.mxu0 %v245
        %v475 = vand.u32 %v284, 4294901760
        %v476 = vsub.f32 %v284, %v475
        %v477 = vand.u32 %v476, 4294901760
        %478 = vmatmul.f32.gmra.mxu0 %v477
        %v479 = vpop.f32.mrf.mxu0
        %v480 = vadd.f32 %v437, %v479
        %v481 = vand.u32 %v287, 4294901760
        %v482 = vsub.f32 %v287, %v481
        %v483 = vand.u32 %v482, 4294901760
        %484 = vmatmul.f32.gmra.mxu0 %v483
        %v485 = vpop.f32.mrf.mxu0
        %v486 = vadd.f32 %v442, %v485
        %v487 = vand.u32 %v290, 4294901760
        %v488 = vsub.f32 %v290, %v487
        %v489 = vand.u32 %v488, 4294901760
        %490 = vmatmul.f32.gmra.mxu0 %v489
        %v491 = vpop.f32.mrf.mxu0
        %v492 = vadd.f32 %v447, %v491
        %v493 = vand.u32 %v293, 4294901760
        %v494 = vsub.f32 %v293, %v493
        %v495 = vand.u32 %v494, 4294901760
        %496 = vmatmul.f32.gmra.mxu0 %v495
        %v497 = vpop.f32.mrf.mxu0
        %v498 = vadd.f32 %v452, %v497
        %v499 = vand.u32 %v296, 4294901760
        %v500 = vsub.f32 %v296, %v499
        %v501 = vand.u32 %v500, 4294901760
        %502 = vmatmul.f32.gmra.mxu0 %v501
        %v503 = vpop.f32.mrf.mxu0
        %v504 = vadd.f32 %v457, %v503
        %505 = vdwg.mxu0
        %506 = vmatpush.msra.mxu0 0.0
        %507 = vmatpush.msra.mxu0 0.0
        %508 = vmatpush.msra.mxu0 0.0
        %509 = vmatpush.msra.mxu0 0.0
        %510 = vmatpush.msra.mxu0 0.0
        %511 = vmatpush.msra.mxu0 0.0
        %512 = vmatpush.msra.mxu0 0.0
        %513 = vmatpush.msra.mxu0 0.0
        %514 = vmatpush.msra.mxu0 0.0
        %515 = vmatpush.msra.mxu0 0.0
        %516 = vmatpush.msra.mxu0 0.0
        %v517 = vsub.f32 %v253, %v253
        %v518 = vand.u32 %v517, 4294901760
        %519 = vmatpush.msra.mxu0 %v518
        %v520 = vsub.f32 %v251, %v251
        %v521 = vand.u32 %v520, 4294901760
        %522 = vmatpush.msra.mxu0 %v521
        %v523 = vsub.f32 %v249, %v249
        %v524 = vand.u32 %v523, 4294901760
        %525 = vmatpush.msra.mxu0 %v524
        %v526 = vsub.f32 %v247, %v247
        %v527 = vand.u32 %v526, 4294901760
        %528 = vmatpush.msra.mxu0 %v527
        %v529 = vsub.f32 %v245, %v245
        %v530 = vand.u32 %v529, 4294901760
        %531 = vmatpush.msra.mxu0 %v530
        %v532 = vand.u32 %v284, 4294901760
        %533 = vmatmul.f32.gmra.mxu0 %v532
        %v534 = vpop.f32.mrf.mxu0
        %v535 = vadd.f32 %v480, %v534
        %v536 = vand.u32 %v287, 4294901760
        %537 = vmatmul.f32.gmra.mxu0 %v536
        %v538 = vpop.f32.mrf.mxu0
        %v539 = vadd.f32 %v486, %v538
        %v540 = vand.u32 %v290, 4294901760
        %541 = vmatmul.f32.gmra.mxu0 %v540
        %v542 = vpop.f32.mrf.mxu0
        %v543 = vadd.f32 %v492, %v542
        %v544 = vand.u32 %v293, 4294901760
        %545 = vmatmul.f32.gmra.mxu0 %v544
        %v546 = vpop.f32.mrf.mxu0
        %v547 = vadd.f32 %v498, %v546
        %v548 = vand.u32 %v296, 4294901760
        %549 = vmatmul.f32.gmra.mxu0 %v548
        %v550 = vpop.f32.mrf.mxu0
        %v551 = vadd.f32 %v504, %v550
        %552 = vdwg.mxu0
        %553 = vmatpush.msra.mxu0 0.0
        %554 = vmatpush.msra.mxu0 0.0
        %555 = vmatpush.msra.mxu0 0.0
        %556 = vmatpush.msra.mxu0 0.0
        %557 = vmatpush.msra.mxu0 0.0
        %558 = vmatpush.msra.mxu0 0.0
        %559 = vmatpush.msra.mxu0 0.0
        %560 = vmatpush.msra.mxu0 0.0
        %561 = vmatpush.msra.mxu0 0.0
        %562 = vmatpush.msra.mxu0 0.0
        %563 = vmatpush.msra.mxu0 0.0
        %564 = vmatpush.msra.mxu0 %v253
        %565 = vmatpush.msra.mxu0 %v251
        %566 = vmatpush.msra.mxu0 %v249
        %567 = vmatpush.msra.mxu0 %v247
        %568 = vmatpush.msra.mxu0 %v245
        %v569 = vand.u32 %v284, 4294901760
        %570 = vmatmul.f32.gmra.mxu0 %v569
        %v571 = vpop.f32.mrf.mxu0
        %v572 = vadd.f32 %v535, %v571
        %v573 = vand.u32 %v287, 4294901760
        %574 = vmatmul.f32.gmra.mxu0 %v573
        %v575 = vpop.f32.mrf.mxu0
        %v576 = vadd.f32 %v539, %v575
        %v577 = vand.u32 %v290, 4294901760
        %578 = vmatmul.f32.gmra.mxu0 %v577
        %v579 = vpop.f32.mrf.mxu0
        %v580 = vadd.f32 %v543, %v579
        %v581 = vand.u32 %v293, 4294901760
        %582 = vmatmul.f32.gmra.mxu0 %v581
        %v583 = vpop.f32.mrf.mxu0
        %v584 = vadd.f32 %v547, %v583
        %v585 = vand.u32 %v296, 4294901760
        %586 = vmatmul.f32.gmra.mxu0 %v585
        %v587 = vpop.f32.mrf.mxu0
        %v588 = vadd.f32 %v551, %v587
        %589 = vdwg.mxu0
        %590 = vmatpush.msra.mxu0 0.0
        %591 = vmatpush.msra.mxu0 0.0
        %592 = vmatpush.msra.mxu0 0.0
        %593 = vmatpush.msra.mxu0 0.0
        %594 = vmatpush.msra.mxu0 0.0
        %595 = vmatpush.msra.mxu0 0.0
        %596 = vmatpush.msra.mxu0 0.0
        %597 = vmatpush.msra.mxu0 0.0
        %598 = vmatpush.msra.mxu0 0.0
        %599 = vmatpush.msra.mxu0 0.0
        %600 = vmatpush.msra.mxu0 0.0
        %601 = vmatpush.msra.mxu0 %v254
        %602 = vmatpush.msra.mxu0 %v252
        %603 = vmatpush.msra.mxu0 %v250
        %604 = vmatpush.msra.mxu0 %v248
        %605 = vmatpush.msra.mxu0 %v246
        %v606 = vand.u32 %v284, 4294901760
        %v607 = vsub.f32 %v284, %v606
        %v608 = vand.u32 %v607, 4294901760
        %v609 = vsub.f32 %v607, %v608
        %v610 = vand.u32 %v609, 4294901760
        %611 = vmatmul.f32.gmra.mxu0 %v610
        %v612 = vpop.f32.mrf.mxu0
        %v613 = vadd.f32 0.0, %v612
        %v614 = vand.u32 %v287, 4294901760
        %v615 = vsub.f32 %v287, %v614
        %v616 = vand.u32 %v615, 4294901760
        %v617 = vsub.f32 %v615, %v616
        %v618 = vand.u32 %v617, 4294901760
        %619 = vmatmul.f32.gmra.mxu0 %v618
        %v620 = vpop.f32.mrf.mxu0
        %v621 = vadd.f32 0.0, %v620
        %v622 = vand.u32 %v290, 4294901760
        %v623 = vsub.f32 %v290, %v622
        %v624 = vand.u32 %v623, 4294901760
        %v625 = vsub.f32 %v623, %v624
        %v626 = vand.u32 %v625, 4294901760
        %627 = vmatmul.f32.gmra.mxu0 %v626
        %v628 = vpop.f32.mrf.mxu0
        %v629 = vadd.f32 0.0, %v628
        %v630 = vand.u32 %v293, 4294901760
        %v631 = vsub.f32 %v293, %v630
        %v632 = vand.u32 %v631, 4294901760
        %v633 = vsub.f32 %v631, %v632
        %v634 = vand.u32 %v633, 4294901760
        %635 = vmatmul.f32.gmra.mxu0 %v634
        %v636 = vpop.f32.mrf.mxu0
        %v637 = vadd.f32 0.0, %v636
        %v638 = vand.u32 %v296, 4294901760
        %v639 = vsub.f32 %v296, %v638
        %v640 = vand.u32 %v639, 4294901760
        %v641 = vsub.f32 %v639, %v640
        %v642 = vand.u32 %v641, 4294901760
        %643 = vmatmul.f32.gmra.mxu0 %v642
        %v644 = vpop.f32.mrf.mxu0
        %v645 = vadd.f32 0.0, %v644
        %646 = vdwg.mxu0
        %647 = vmatpush.msra.mxu0 0.0
        %648 = vmatpush.msra.mxu0 0.0
        %649 = vmatpush.msra.mxu0 0.0
        %650 = vmatpush.msra.mxu0 0.0
        %651 = vmatpush.msra.mxu0 0.0
        %652 = vmatpush.msra.mxu0 0.0
        %653 = vmatpush.msra.mxu0 0.0
        %654 = vmatpush.msra.mxu0 0.0
        %655 = vmatpush.msra.mxu0 0.0
        %656 = vmatpush.msra.mxu0 0.0
        %657 = vmatpush.msra.mxu0 0.0
        %v658 = vsub.f32 %v254, %v254
        %v659 = vand.u32 %v658, 4294901760
        %v660 = vsub.f32 %v658, %v659
        %v661 = vand.u32 %v660, 4294901760
        %662 = vmatpush.msra.mxu0 %v661
        %v663 = vsub.f32 %v252, %v252
        %v664 = vand.u32 %v663, 4294901760
        %v665 = vsub.f32 %v663, %v664
        %v666 = vand.u32 %v665, 4294901760
        %667 = vmatpush.msra.mxu0 %v666
        %v668 = vsub.f32 %v250, %v250
        %v669 = vand.u32 %v668, 4294901760
        %v670 = vsub.f32 %v668, %v669
        %v671 = vand.u32 %v670, 4294901760
        %672 = vmatpush.msra.mxu0 %v671
        %v673 = vsub.f32 %v248, %v248
        %v674 = vand.u32 %v673, 4294901760
        %v675 = vsub.f32 %v673, %v674
        %v676 = vand.u32 %v675, 4294901760
        %677 = vmatpush.msra.mxu0 %v676
        %v678 = vsub.f32 %v246, %v246
        %v679 = vand.u32 %v678, 4294901760
        %v680 = vsub.f32 %v678, %v679
        %v681 = vand.u32 %v680, 4294901760
        %682 = vmatpush.msra.mxu0 %v681
        %v683 = vand.u32 %v284, 4294901760
        %684 = vmatmul.f32.gmra.mxu0 %v683
        %v685 = vpop.f32.mrf.mxu0
        %v686 = vadd.f32 %v613, %v685
        %v687 = vand.u32 %v287, 4294901760
        %688 = vmatmul.f32.gmra.mxu0 %v687
        %v689 = vpop.f32.mrf.mxu0
        %v690 = vadd.f32 %v621, %v689
        %v691 = vand.u32 %v290, 4294901760
        %692 = vmatmul.f32.gmra.mxu0 %v691
        %v693 = vpop.f32.mrf.mxu0
        %v694 = vadd.f32 %v629, %v693
        %v695 = vand.u32 %v293, 4294901760
        %696 = vmatmul.f32.gmra.mxu0 %v695
        %v697 = vpop.f32.mrf.mxu0
        %v698 = vadd.f32 %v637, %v697
        %v699 = vand.u32 %v296, 4294901760
        %700 = vmatmul.f32.gmra.mxu0 %v699
        %v701 = vpop.f32.mrf.mxu0
        %v702 = vadd.f32 %v645, %v701
        %703 = vdwg.mxu0
        %704 = vmatpush.msra.mxu0 0.0
        %705 = vmatpush.msra.mxu0 0.0
        %706 = vmatpush.msra.mxu0 0.0
        %707 = vmatpush.msra.mxu0 0.0
        %708 = vmatpush.msra.mxu0 0.0
        %709 = vmatpush.msra.mxu0 0.0
        %710 = vmatpush.msra.mxu0 0.0
        %711 = vmatpush.msra.mxu0 0.0
        %712 = vmatpush.msra.mxu0 0.0
        %713 = vmatpush.msra.mxu0 0.0
        %714 = vmatpush.msra.mxu0 0.0
        %v715 = vsub.f32 %v254, %v254
        %716 = vmatpush.msra.mxu0 %v715
        %v717 = vsub.f32 %v252, %v252
        %718 = vmatpush.msra.mxu0 %v717
        %v719 = vsub.f32 %v250, %v250
        %720 = vmatpush.msra.mxu0 %v719
        %v721 = vsub.f32 %v248, %v248
        %722 = vmatpush.msra.mxu0 %v721
        %v723 = vsub.f32 %v246, %v246
        %724 = vmatpush.msra.mxu0 %v723
        %v725 = vand.u32 %v284, 4294901760
        %v726 = vsub.f32 %v284, %v725
        %727 = vmatmul.f32.gmra.mxu0 %v726
        %v728 = vpop.f32.mrf.mxu0
        %v729 = vadd.f32 %v686, %v728
        %v730 = vand.u32 %v287, 4294901760
        %v731 = vsub.f32 %v287, %v730
        %732 = vmatmul.f32.gmra.mxu0 %v731
        %v733 = vpop.f32.mrf.mxu0
        %v734 = vadd.f32 %v690, %v733
        %v735 = vand.u32 %v290, 4294901760
        %v736 = vsub.f32 %v290, %v735
        %737 = vmatmul.f32.gmra.mxu0 %v736
        %v738 = vpop.f32.mrf.mxu0
        %v739 = vadd.f32 %v694, %v738
        %v740 = vand.u32 %v293, 4294901760
        %v741 = vsub.f32 %v293, %v740
        %742 = vmatmul.f32.gmra.mxu0 %v741
        %v743 = vpop.f32.mrf.mxu0
        %v744 = vadd.f32 %v698, %v743
        %v745 = vand.u32 %v296, 4294901760
        %v746 = vsub.f32 %v296, %v745
        %747 = vmatmul.f32.gmra.mxu0 %v746
        %v748 = vpop.f32.mrf.mxu0
        %v749 = vadd.f32 %v702, %v748
        %750 = vdwg.mxu0
        %751 = vmatpush.msra.mxu0 0.0
        %752 = vmatpush.msra.mxu0 0.0
        %753 = vmatpush.msra.mxu0 0.0
        %754 = vmatpush.msra.mxu0 0.0
        %755 = vmatpush.msra.mxu0 0.0
        %756 = vmatpush.msra.mxu0 0.0
        %757 = vmatpush.msra.mxu0 0.0
        %758 = vmatpush.msra.mxu0 0.0
        %759 = vmatpush.msra.mxu0 0.0
        %760 = vmatpush.msra.mxu0 0.0
        %761 = vmatpush.msra.mxu0 0.0
        %762 = vmatpush.msra.mxu0 %v254
        %763 = vmatpush.msra.mxu0 %v252
        %764 = vmatpush.msra.mxu0 %v250
        %765 = vmatpush.msra.mxu0 %v248
        %766 = vmatpush.msra.mxu0 %v246
        %v767 = vand.u32 %v284, 4294901760
        %v768 = vsub.f32 %v284, %v767
        %v769 = vand.u32 %v768, 4294901760
        %770 = vmatmul.f32.gmra.mxu0 %v769
        %v771 = vpop.f32.mrf.mxu0
        %v772 = vadd.f32 %v729, %v771
        %v773 = vand.u32 %v287, 4294901760
        %v774 = vsub.f32 %v287, %v773
        %v775 = vand.u32 %v774, 4294901760
        %776 = vmatmul.f32.gmra.mxu0 %v775
        %v777 = vpop.f32.mrf.mxu0
        %v778 = vadd.f32 %v734, %v777
        %v779 = vand.u32 %v290, 4294901760
        %v780 = vsub.f32 %v290, %v779
        %v781 = vand.u32 %v780, 4294901760
        %782 = vmatmul.f32.gmra.mxu0 %v781
        %v783 = vpop.f32.mrf.mxu0
        %v784 = vadd.f32 %v739, %v783
        %v785 = vand.u32 %v293, 4294901760
        %v786 = vsub.f32 %v293, %v785
        %v787 = vand.u32 %v786, 4294901760
        %788 = vmatmul.f32.gmra.mxu0 %v787
        %v789 = vpop.f32.mrf.mxu0
        %v790 = vadd.f32 %v744, %v789
        %v791 = vand.u32 %v296, 4294901760
        %v792 = vsub.f32 %v296, %v791
        %v793 = vand.u32 %v792, 4294901760
        %794 = vmatmul.f32.gmra.mxu0 %v793
        %v795 = vpop.f32.mrf.mxu0
        %v796 = vadd.f32 %v749, %v795
        %797 = vdwg.mxu0
        %798 = vmatpush.msra.mxu0 0.0
        %799 = vmatpush.msra.mxu0 0.0
        %800 = vmatpush.msra.mxu0 0.0
        %801 = vmatpush.msra.mxu0 0.0
        %802 = vmatpush.msra.mxu0 0.0
        %803 = vmatpush.msra.mxu0 0.0
        %804 = vmatpush.msra.mxu0 0.0
        %805 = vmatpush.msra.mxu0 0.0
        %806 = vmatpush.msra.mxu0 0.0
        %807 = vmatpush.msra.mxu0 0.0
        %808 = vmatpush.msra.mxu0 0.0
        %v809 = vsub.f32 %v254, %v254
        %v810 = vand.u32 %v809, 4294901760
        %811 = vmatpush.msra.mxu0 %v810
        %v812 = vsub.f32 %v252, %v252
        %v813 = vand.u32 %v812, 4294901760
        %814 = vmatpush.msra.mxu0 %v813
        %v815 = vsub.f32 %v250, %v250
        %v816 = vand.u32 %v815, 4294901760
        %817 = vmatpush.msra.mxu0 %v816
        %v818 = vsub.f32 %v248, %v248
        %v819 = vand.u32 %v818, 4294901760
        %820 = vmatpush.msra.mxu0 %v819
        %v821 = vsub.f32 %v246, %v246
        %v822 = vand.u32 %v821, 4294901760
        %823 = vmatpush.msra.mxu0 %v822
        %v824 = vand.u32 %v284, 4294901760
        %825 = vmatmul.f32.gmra.mxu0 %v824
        %v826 = vpop.f32.mrf.mxu0
        %v827 = vadd.f32 %v772, %v826
        %v828 = vand.u32 %v287, 4294901760
        %829 = vmatmul.f32.gmra.mxu0 %v828
        %v830 = vpop.f32.mrf.mxu0
        %v831 = vadd.f32 %v778, %v830
        %v832 = vand.u32 %v290, 4294901760
        %833 = vmatmul.f32.gmra.mxu0 %v832
        %v834 = vpop.f32.mrf.mxu0
        %v835 = vadd.f32 %v784, %v834
        %v836 = vand.u32 %v293, 4294901760
        %837 = vmatmul.f32.gmra.mxu0 %v836
        %v838 = vpop.f32.mrf.mxu0
        %v839 = vadd.f32 %v790, %v838
        %v840 = vand.u32 %v296, 4294901760
        %841 = vmatmul.f32.gmra.mxu0 %v840
        %v842 = vpop.f32.mrf.mxu0
        %v843 = vadd.f32 %v796, %v842
        %844 = vdwg.mxu0
        %845 = vmatpush.msra.mxu0 0.0
        %846 = vmatpush.msra.mxu0 0.0
        %847 = vmatpush.msra.mxu0 0.0
        %848 = vmatpush.msra.mxu0 0.0
        %849 = vmatpush.msra.mxu0 0.0
        %850 = vmatpush.msra.mxu0 0.0
        %851 = vmatpush.msra.mxu0 0.0
        %852 = vmatpush.msra.mxu0 0.0
        %853 = vmatpush.msra.mxu0 0.0
        %854 = vmatpush.msra.mxu0 0.0
        %855 = vmatpush.msra.mxu0 0.0
        %856 = vmatpush.msra.mxu0 %v254
        %857 = vmatpush.msra.mxu0 %v252
        %858 = vmatpush.msra.mxu0 %v250
        %859 = vmatpush.msra.mxu0 %v248
        %860 = vmatpush.msra.mxu0 %v246
        %v861 = vand.u32 %v284, 4294901760
        %862 = vmatmul.f32.gmra.mxu0 %v861
        %v863 = vpop.f32.mrf.mxu0
        %v864 = vadd.f32 %v827, %v863
        %v865 = vand.u32 %v287, 4294901760
        %866 = vmatmul.f32.gmra.mxu0 %v865
        %v867 = vpop.f32.mrf.mxu0
        %v868 = vadd.f32 %v831, %v867
        %v869 = vand.u32 %v290, 4294901760
        %870 = vmatmul.f32.gmra.mxu0 %v869
        %v871 = vpop.f32.mrf.mxu0
        %v872 = vadd.f32 %v835, %v871
        %v873 = vand.u32 %v293, 4294901760
        %874 = vmatmul.f32.gmra.mxu0 %v873
        %v875 = vpop.f32.mrf.mxu0
        %v876 = vadd.f32 %v839, %v875
        %v877 = vand.u32 %v296, 4294901760
        %878 = vmatmul.f32.gmra.mxu0 %v877
        %v879 = vpop.f32.mrf.mxu0
        %v880 = vadd.f32 %v843, %v879
        %881 = vdwg.mxu0
        %v882 = vld [vmem:[#allocation7] sm:$0xff]
        %v883 = vld [vmem:[#allocation7 + $0x8] sm:$0xff]
        %v884 = vld [vmem:[#allocation7 + $0x10] sm:$0xff]
        %v885 = vld [vmem:[#allocation7 + $0x18] sm:$0xff]
        %v886 = vld [vmem:[#allocation7 + $0x20] sm:$0xff]
        %v888 = vsel %vm282, %v882, 0
        %v891 = vsel %vm282, %v883, 0
        %v894 = vsel %vm282, %v884, 0
        %v897 = vsel %vm282, %v885, 0
        %v900 = vsel %vm282, %v886, 0
        %902 = vmatpush.msra.mxu0 0.0
        %903 = vmatpush.msra.mxu0 0.0
        %904 = vmatpush.msra.mxu0 0.0
        %905 = vmatpush.msra.mxu0 0.0
        %906 = vmatpush.msra.mxu0 0.0
        %907 = vmatpush.msra.mxu0 0.0
        %908 = vmatpush.msra.mxu0 0.0
        %909 = vmatpush.msra.mxu0 0.0
        %910 = vmatpush.msra.mxu0 0.0
        %911 = vmatpush.msra.mxu0 0.0
        %912 = vmatpush.msra.mxu0 0.0
        %913 = vmatpush.msra.mxu0 %v275
        %914 = vmatpush.msra.mxu0 %v273
        %915 = vmatpush.msra.mxu0 %v271
        %916 = vmatpush.msra.mxu0 %v269
        %917 = vmatpush.msra.mxu0 %v267
        %v918 = vand.u32 %v888, 4294901760
        %v919 = vsub.f32 %v888, %v918
        %v920 = vand.u32 %v919, 4294901760
        %v921 = vsub.f32 %v919, %v920
        %v922 = vand.u32 %v921, 4294901760
        %923 = vmatmul.f32.gmra.mxu0 %v922
        %v924 = vpop.f32.mrf.mxu0
        %v925 = vadd.f32 0.0, %v924
        %v926 = vand.u32 %v891, 4294901760
        %v927 = vsub.f32 %v891, %v926
        %v928 = vand.u32 %v927, 4294901760
        %v929 = vsub.f32 %v927, %v928
        %v930 = vand.u32 %v929, 4294901760
        %931 = vmatmul.f32.gmra.mxu0 %v930
        %v932 = vpop.f32.mrf.mxu0
        %v933 = vadd.f32 0.0, %v932
        %v934 = vand.u32 %v894, 4294901760
        %v935 = vsub.f32 %v894, %v934
        %v936 = vand.u32 %v935, 4294901760
        %v937 = vsub.f32 %v935, %v936
        %v938 = vand.u32 %v937, 4294901760
        %939 = vmatmul.f32.gmra.mxu0 %v938
        %v940 = vpop.f32.mrf.mxu0
        %v941 = vadd.f32 0.0, %v940
        %v942 = vand.u32 %v897, 4294901760
        %v943 = vsub.f32 %v897, %v942
        %v944 = vand.u32 %v943, 4294901760
        %v945 = vsub.f32 %v943, %v944
        %v946 = vand.u32 %v945, 4294901760
        %947 = vmatmul.f32.gmra.mxu0 %v946
        %v948 = vpop.f32.mrf.mxu0
        %v949 = vadd.f32 0.0, %v948
        %v950 = vand.u32 %v900, 4294901760
        %v951 = vsub.f32 %v900, %v950
        %v952 = vand.u32 %v951, 4294901760
        %v953 = vsub.f32 %v951, %v952
        %v954 = vand.u32 %v953, 4294901760
        %955 = vmatmul.f32.gmra.mxu0 %v954
        %v956 = vpop.f32.mrf.mxu0
        %v957 = vadd.f32 0.0, %v956
        %958 = vdwg.mxu0
        %959 = vmatpush.msra.mxu0 0.0
        %960 = vmatpush.msra.mxu0 0.0
        %961 = vmatpush.msra.mxu0 0.0
        %962 = vmatpush.msra.mxu0 0.0
        %963 = vmatpush.msra.mxu0 0.0
        %964 = vmatpush.msra.mxu0 0.0
        %965 = vmatpush.msra.mxu0 0.0
        %966 = vmatpush.msra.mxu0 0.0
        %967 = vmatpush.msra.mxu0 0.0
        %968 = vmatpush.msra.mxu0 0.0
        %969 = vmatpush.msra.mxu0 0.0
        %v970 = vsub.f32 %v275, %v275
        %v971 = vand.u32 %v970, 4294901760
        %v972 = vsub.f32 %v970, %v971
        %v973 = vand.u32 %v972, 4294901760
        %974 = vmatpush.msra.mxu0 %v973
        %v975 = vsub.f32 %v273, %v273
        %v976 = vand.u32 %v975, 4294901760
        %v977 = vsub.f32 %v975, %v976
        %v978 = vand.u32 %v977, 4294901760
        %979 = vmatpush.msra.mxu0 %v978
        %v980 = vsub.f32 %v271, %v271
        %v981 = vand.u32 %v980, 4294901760
        %v982 = vsub.f32 %v980, %v981
        %v983 = vand.u32 %v982, 4294901760
        %984 = vmatpush.msra.mxu0 %v983
        %v985 = vsub.f32 %v269, %v269
        %v986 = vand.u32 %v985, 4294901760
        %v987 = vsub.f32 %v985, %v986
        %v988 = vand.u32 %v987, 4294901760
        %989 = vmatpush.msra.mxu0 %v988
        %v990 = vsub.f32 %v267, %v267
        %v991 = vand.u32 %v990, 4294901760
        %v992 = vsub.f32 %v990, %v991
        %v993 = vand.u32 %v992, 4294901760
        %994 = vmatpush.msra.mxu0 %v993
        %v995 = vand.u32 %v888, 4294901760
        %996 = vmatmul.f32.gmra.mxu0 %v995
        %v997 = vpop.f32.mrf.mxu0
        %v998 = vadd.f32 %v925, %v997
        %v999 = vand.u32 %v891, 4294901760
        %1000 = vmatmul.f32.gmra.mxu0 %v999
        %v1001 = vpop.f32.mrf.mxu0
        %v1002 = vadd.f32 %v933, %v1001
        %v1003 = vand.u32 %v894, 4294901760
        %1004 = vmatmul.f32.gmra.mxu0 %v1003
        %v1005 = vpop.f32.mrf.mxu0
        %v1006 = vadd.f32 %v941, %v1005
        %v1007 = vand.u32 %v897, 4294901760
        %1008 = vmatmul.f32.gmra.mxu0 %v1007
        %v1009 = vpop.f32.mrf.mxu0
        %v1010 = vadd.f32 %v949, %v1009
        %v1011 = vand.u32 %v900, 4294901760
        %1012 = vmatmul.f32.gmra.mxu0 %v1011
        %v1013 = vpop.f32.mrf.mxu0
        %v1014 = vadd.f32 %v957, %v1013
        %1015 = vdwg.mxu0
        %1016 = vmatpush.msra.mxu0 0.0
        %1017 = vmatpush.msra.mxu0 0.0
        %1018 = vmatpush.msra.mxu0 0.0
        %1019 = vmatpush.msra.mxu0 0.0
        %1020 = vmatpush.msra.mxu0 0.0
        %1021 = vmatpush.msra.mxu0 0.0
        %1022 = vmatpush.msra.mxu0 0.0
        %1023 = vmatpush.msra.mxu0 0.0
        %1024 = vmatpush.msra.mxu0 0.0
        %1025 = vmatpush.msra.mxu0 0.0
        %1026 = vmatpush.msra.mxu0 0.0
        %v1027 = vsub.f32 %v275, %v275
        %1028 = vmatpush.msra.mxu0 %v1027
        %v1029 = vsub.f32 %v273, %v273
        %1030 = vmatpush.msra.mxu0 %v1029
        %v1031 = vsub.f32 %v271, %v271
        %1032 = vmatpush.msra.mxu0 %v1031
        %v1033 = vsub.f32 %v269, %v269
        %1034 = vmatpush.msra.mxu0 %v1033
        %v1035 = vsub.f32 %v267, %v267
        %1036 = vmatpush.msra.mxu0 %v1035
        %v1037 = vand.u32 %v888, 4294901760
        %v1038 = vsub.f32 %v888, %v1037
        %1039 = vmatmul.f32.gmra.mxu0 %v1038
        %v1040 = vpop.f32.mrf.mxu0
        %v1041 = vadd.f32 %v998, %v1040
        %v1042 = vand.u32 %v891, 4294901760
        %v1043 = vsub.f32 %v891, %v1042
        %1044 = vmatmul.f32.gmra.mxu0 %v1043
        %v1045 = vpop.f32.mrf.mxu0
        %v1046 = vadd.f32 %v1002, %v1045
        %v1047 = vand.u32 %v894, 4294901760
        %v1048 = vsub.f32 %v894, %v1047
        %1049 = vmatmul.f32.gmra.mxu0 %v1048
        %v1050 = vpop.f32.mrf.mxu0
        %v1051 = vadd.f32 %v1006, %v1050
        %v1052 = vand.u32 %v897, 4294901760
        %v1053 = vsub.f32 %v897, %v1052
        %1054 = vmatmul.f32.gmra.mxu0 %v1053
        %v1055 = vpop.f32.mrf.mxu0
        %v1056 = vadd.f32 %v1010, %v1055
        %v1057 = vand.u32 %v900, 4294901760
        %v1058 = vsub.f32 %v900, %v1057
        %1059 = vmatmul.f32.gmra.mxu0 %v1058
        %v1060 = vpop.f32.mrf.mxu0
        %v1061 = vadd.f32 %v1014, %v1060
        %1062 = vdwg.mxu0
        %1063 = vmatpush.msra.mxu0 0.0
        %1064 = vmatpush.msra.mxu0 0.0
        %1065 = vmatpush.msra.mxu0 0.0
        %1066 = vmatpush.msra.mxu0 0.0
        %1067 = vmatpush.msra.mxu0 0.0
        %1068 = vmatpush.msra.mxu0 0.0
        %1069 = vmatpush.msra.mxu0 0.0
        %1070 = vmatpush.msra.mxu0 0.0
        %1071 = vmatpush.msra.mxu0 0.0
        %1072 = vmatpush.msra.mxu0 0.0
        %1073 = vmatpush.msra.mxu0 0.0
        %1074 = vmatpush.msra.mxu0 %v275
        %1075 = vmatpush.msra.mxu0 %v273
        %1076 = vmatpush.msra.mxu0 %v271
        %1077 = vmatpush.msra.mxu0 %v269
        %1078 = vmatpush.msra.mxu0 %v267
        %v1079 = vand.u32 %v888, 4294901760
        %v1080 = vsub.f32 %v888, %v1079
        %v1081 = vand.u32 %v1080, 4294901760
        %1082 = vmatmul.f32.gmra.mxu0 %v1081
        %v1083 = vpop.f32.mrf.mxu0
        %v1084 = vadd.f32 %v1041, %v1083
        %v1085 = vand.u32 %v891, 4294901760
        %v1086 = vsub.f32 %v891, %v1085
        %v1087 = vand.u32 %v1086, 4294901760
        %1088 = vmatmul.f32.gmra.mxu0 %v1087
        %v1089 = vpop.f32.mrf.mxu0
        %v1090 = vadd.f32 %v1046, %v1089
        %v1091 = vand.u32 %v894, 4294901760
        %v1092 = vsub.f32 %v894, %v1091
        %v1093 = vand.u32 %v1092, 4294901760
        %1094 = vmatmul.f32.gmra.mxu0 %v1093
        %v1095 = vpop.f32.mrf.mxu0
        %v1096 = vadd.f32 %v1051, %v1095
        %v1097 = vand.u32 %v897, 4294901760
        %v1098 = vsub.f32 %v897, %v1097
        %v1099 = vand.u32 %v1098, 4294901760
        %1100 = vmatmul.f32.gmra.mxu0 %v1099
        %v1101 = vpop.f32.mrf.mxu0
        %v1102 = vadd.f32 %v1056, %v1101
        %v1103 = vand.u32 %v900, 4294901760
        %v1104 = vsub.f32 %v900, %v1103
        %v1105 = vand.u32 %v1104, 4294901760
        %1106 = vmatmul.f32.gmra.mxu0 %v1105
        %v1107 = vpop.f32.mrf.mxu0
        %v1108 = vadd.f32 %v1061, %v1107
        %1109 = vdwg.mxu0
        %1110 = vmatpush.msra.mxu0 0.0
        %1111 = vmatpush.msra.mxu0 0.0
        %1112 = vmatpush.msra.mxu0 0.0
        %1113 = vmatpush.msra.mxu0 0.0
        %1114 = vmatpush.msra.mxu0 0.0
        %1115 = vmatpush.msra.mxu0 0.0
        %1116 = vmatpush.msra.mxu0 0.0
        %1117 = vmatpush.msra.mxu0 0.0
        %1118 = vmatpush.msra.mxu0 0.0
        %1119 = vmatpush.msra.mxu0 0.0
        %1120 = vmatpush.msra.mxu0 0.0
        %v1121 = vsub.f32 %v275, %v275
        %v1122 = vand.u32 %v1121, 4294901760
        %1123 = vmatpush.msra.mxu0 %v1122
        %v1124 = vsub.f32 %v273, %v273
        %v1125 = vand.u32 %v1124, 4294901760
        %1126 = vmatpush.msra.mxu0 %v1125
        %v1127 = vsub.f32 %v271, %v271
        %v1128 = vand.u32 %v1127, 4294901760
        %1129 = vmatpush.msra.mxu0 %v1128
        %v1130 = vsub.f32 %v269, %v269
        %v1131 = vand.u32 %v1130, 4294901760
        %1132 = vmatpush.msra.mxu0 %v1131
        %v1133 = vsub.f32 %v267, %v267
        %v1134 = vand.u32 %v1133, 4294901760
        %1135 = vmatpush.msra.mxu0 %v1134
        %v1136 = vand.u32 %v888, 4294901760
        %1137 = vmatmul.f32.gmra.mxu0 %v1136
        %v1138 = vpop.f32.mrf.mxu0
        %v1139 = vadd.f32 %v1084, %v1138
        %v1140 = vand.u32 %v891, 4294901760
        %1141 = vmatmul.f32.gmra.mxu0 %v1140
        %v1142 = vpop.f32.mrf.mxu0
        %v1143 = vadd.f32 %v1090, %v1142
        %v1144 = vand.u32 %v894, 4294901760
        %1145 = vmatmul.f32.gmra.mxu0 %v1144
        %v1146 = vpop.f32.mrf.mxu0
        %v1147 = vadd.f32 %v1096, %v1146
        %v1148 = vand.u32 %v897, 4294901760
        %1149 = vmatmul.f32.gmra.mxu0 %v1148
        %v1150 = vpop.f32.mrf.mxu0
        %v1151 = vadd.f32 %v1102, %v1150
        %v1152 = vand.u32 %v900, 4294901760
        %1153 = vmatmul.f32.gmra.mxu0 %v1152
        %v1154 = vpop.f32.mrf.mxu0
        %v1155 = vadd.f32 %v1108, %v1154
        %1156 = vdwg.mxu0
        %1157 = vmatpush.msra.mxu0 0.0
        %1158 = vmatpush.msra.mxu0 0.0
        %1159 = vmatpush.msra.mxu0 0.0
        %1160 = vmatpush.msra.mxu0 0.0
        %1161 = vmatpush.msra.mxu0 0.0
        %1162 = vmatpush.msra.mxu0 0.0
        %1163 = vmatpush.msra.mxu0 0.0
        %1164 = vmatpush.msra.mxu0 0.0
        %1165 = vmatpush.msra.mxu0 0.0
        %1166 = vmatpush.msra.mxu0 0.0
        %1167 = vmatpush.msra.mxu0 0.0
        %1168 = vmatpush.msra.mxu0 %v275
        %1169 = vmatpush.msra.mxu0 %v273
        %1170 = vmatpush.msra.mxu0 %v271
        %1171 = vmatpush.msra.mxu0 %v269
        %1172 = vmatpush.msra.mxu0 %v267
        %v1173 = vand.u32 %v888, 4294901760
        %1174 = vmatmul.f32.gmra.mxu0 %v1173
        %v1175 = vpop.f32.mrf.mxu0
        %v1176 = vadd.f32 %v1139, %v1175
        %v1177 = vand.u32 %v891, 4294901760
        %1178 = vmatmul.f32.gmra.mxu0 %v1177
        %v1179 = vpop.f32.mrf.mxu0
        %v1180 = vadd.f32 %v1143, %v1179
        %v1181 = vand.u32 %v894, 4294901760
        %1182 = vmatmul.f32.gmra.mxu0 %v1181
        %v1183 = vpop.f32.mrf.mxu0
        %v1184 = vadd.f32 %v1147, %v1183
        %v1185 = vand.u32 %v897, 4294901760
        %1186 = vmatmul.f32.gmra.mxu0 %v1185
        %v1187 = vpop.f32.mrf.mxu0
        %v1188 = vadd.f32 %v1151, %v1187
        %v1189 = vand.u32 %v900, 4294901760
        %1190 = vmatmul.f32.gmra.mxu0 %v1189
        %v1191 = vpop.f32.mrf.mxu0
        %v1192 = vadd.f32 %v1155, %v1191
        %1193 = vdwg.mxu0
        %1194 = vmatpush.msra.mxu0 0.0
        %1195 = vmatpush.msra.mxu0 0.0
        %1196 = vmatpush.msra.mxu0 0.0
        %1197 = vmatpush.msra.mxu0 0.0
        %1198 = vmatpush.msra.mxu0 0.0
        %1199 = vmatpush.msra.mxu0 0.0
        %1200 = vmatpush.msra.mxu0 0.0
        %1201 = vmatpush.msra.mxu0 0.0
        %1202 = vmatpush.msra.mxu0 0.0
        %1203 = vmatpush.msra.mxu0 0.0
        %1204 = vmatpush.msra.mxu0 0.0
        %1205 = vmatpush.msra.mxu0 %v276
        %1206 = vmatpush.msra.mxu0 %v274
        %1207 = vmatpush.msra.mxu0 %v272
        %1208 = vmatpush.msra.mxu0 %v270
        %1209 = vmatpush.msra.mxu0 %v268
        %v1210 = vand.u32 %v888, 4294901760
        %v1211 = vsub.f32 %v888, %v1210
        %v1212 = vand.u32 %v1211, 4294901760
        %v1213 = vsub.f32 %v1211, %v1212
        %v1214 = vand.u32 %v1213, 4294901760
        %1215 = vmatmul.f32.gmra.mxu0 %v1214
        %v1216 = vpop.f32.mrf.mxu0
        %v1217 = vadd.f32 0.0, %v1216
        %v1218 = vand.u32 %v891, 4294901760
        %v1219 = vsub.f32 %v891, %v1218
        %v1220 = vand.u32 %v1219, 4294901760
        %v1221 = vsub.f32 %v1219, %v1220
        %v1222 = vand.u32 %v1221, 4294901760
        %1223 = vmatmul.f32.gmra.mxu0 %v1222
        %v1224 = vpop.f32.mrf.mxu0
        %v1225 = vadd.f32 0.0, %v1224
        %v1226 = vand.u32 %v894, 4294901760
        %v1227 = vsub.f32 %v894, %v1226
        %v1228 = vand.u32 %v1227, 4294901760
        %v1229 = vsub.f32 %v1227, %v1228
        %v1230 = vand.u32 %v1229, 4294901760
        %1231 = vmatmul.f32.gmra.mxu0 %v1230
        %v1232 = vpop.f32.mrf.mxu0
        %v1233 = vadd.f32 0.0, %v1232
        %v1234 = vand.u32 %v897, 4294901760
        %v1235 = vsub.f32 %v897, %v1234
        %v1236 = vand.u32 %v1235, 4294901760
        %v1237 = vsub.f32 %v1235, %v1236
        %v1238 = vand.u32 %v1237, 4294901760
        %1239 = vmatmul.f32.gmra.mxu0 %v1238
        %v1240 = vpop.f32.mrf.mxu0
        %v1241 = vadd.f32 0.0, %v1240
        %v1242 = vand.u32 %v900, 4294901760
        %v1243 = vsub.f32 %v900, %v1242
        %v1244 = vand.u32 %v1243, 4294901760
        %v1245 = vsub.f32 %v1243, %v1244
        %v1246 = vand.u32 %v1245, 4294901760
        %1247 = vmatmul.f32.gmra.mxu0 %v1246
        %v1248 = vpop.f32.mrf.mxu0
        %v1249 = vadd.f32 0.0, %v1248
        %1250 = vdwg.mxu0
        %1251 = vmatpush.msra.mxu0 0.0
        %1252 = vmatpush.msra.mxu0 0.0
        %1253 = vmatpush.msra.mxu0 0.0
        %1254 = vmatpush.msra.mxu0 0.0
        %1255 = vmatpush.msra.mxu0 0.0
        %1256 = vmatpush.msra.mxu0 0.0
        %1257 = vmatpush.msra.mxu0 0.0
        %1258 = vmatpush.msra.mxu0 0.0
        %1259 = vmatpush.msra.mxu0 0.0
        %1260 = vmatpush.msra.mxu0 0.0
        %1261 = vmatpush.msra.mxu0 0.0
        %v1262 = vsub.f32 %v276, %v276
        %v1263 = vand.u32 %v1262, 4294901760
        %v1264 = vsub.f32 %v1262, %v1263
        %v1265 = vand.u32 %v1264, 4294901760
        %1266 = vmatpush.msra.mxu0 %v1265
        %v1267 = vsub.f32 %v274, %v274
        %v1268 = vand.u32 %v1267, 4294901760
        %v1269 = vsub.f32 %v1267, %v1268
        %v1270 = vand.u32 %v1269, 4294901760
        %1271 = vmatpush.msra.mxu0 %v1270
        %v1272 = vsub.f32 %v272, %v272
        %v1273 = vand.u32 %v1272, 4294901760
        %v1274 = vsub.f32 %v1272, %v1273
        %v1275 = vand.u32 %v1274, 4294901760
        %1276 = vmatpush.msra.mxu0 %v1275
        %v1277 = vsub.f32 %v270, %v270
        %v1278 = vand.u32 %v1277, 4294901760
        %v1279 = vsub.f32 %v1277, %v1278
        %v1280 = vand.u32 %v1279, 4294901760
        %1281 = vmatpush.msra.mxu0 %v1280
        %v1282 = vsub.f32 %v268, %v268
        %v1283 = vand.u32 %v1282, 4294901760
        %v1284 = vsub.f32 %v1282, %v1283
        %v1285 = vand.u32 %v1284, 4294901760
        %1286 = vmatpush.msra.mxu0 %v1285
        %v1287 = vand.u32 %v888, 4294901760
        %1288 = vmatmul.f32.gmra.mxu0 %v1287
        %v1289 = vpop.f32.mrf.mxu0
        %v1290 = vadd.f32 %v1217, %v1289
        %v1291 = vand.u32 %v891, 4294901760
        %1292 = vmatmul.f32.gmra.mxu0 %v1291
        %v1293 = vpop.f32.mrf.mxu0
        %v1294 = vadd.f32 %v1225, %v1293
        %v1295 = vand.u32 %v894, 4294901760
        %1296 = vmatmul.f32.gmra.mxu0 %v1295
        %v1297 = vpop.f32.mrf.mxu0
        %v1298 = vadd.f32 %v1233, %v1297
        %v1299 = vand.u32 %v897, 4294901760
        %1300 = vmatmul.f32.gmra.mxu0 %v1299
        %v1301 = vpop.f32.mrf.mxu0
        %v1302 = vadd.f32 %v1241, %v1301
        %v1303 = vand.u32 %v900, 4294901760
        %1304 = vmatmul.f32.gmra.mxu0 %v1303
        %v1305 = vpop.f32.mrf.mxu0
        %v1306 = vadd.f32 %v1249, %v1305
        %1307 = vdwg.mxu0
        %1308 = vmatpush.msra.mxu0 0.0
        %1309 = vmatpush.msra.mxu0 0.0
        %1310 = vmatpush.msra.mxu0 0.0
        %1311 = vmatpush.msra.mxu0 0.0
        %1312 = vmatpush.msra.mxu0 0.0
        %1313 = vmatpush.msra.mxu0 0.0
        %1314 = vmatpush.msra.mxu0 0.0
        %1315 = vmatpush.msra.mxu0 0.0
        %1316 = vmatpush.msra.mxu0 0.0
        %1317 = vmatpush.msra.mxu0 0.0
        %1318 = vmatpush.msra.mxu0 0.0
        %v1319 = vsub.f32 %v276, %v276
        %1320 = vmatpush.msra.mxu0 %v1319
        %v1321 = vsub.f32 %v274, %v274
        %1322 = vmatpush.msra.mxu0 %v1321
        %v1323 = vsub.f32 %v272, %v272
        %1324 = vmatpush.msra.mxu0 %v1323
        %v1325 = vsub.f32 %v270, %v270
        %1326 = vmatpush.msra.mxu0 %v1325
        %v1327 = vsub.f32 %v268, %v268
        %1328 = vmatpush.msra.mxu0 %v1327
        %v1329 = vand.u32 %v888, 4294901760
        %v1330 = vsub.f32 %v888, %v1329
        %1331 = vmatmul.f32.gmra.mxu0 %v1330
        %v1332 = vpop.f32.mrf.mxu0
        %v1333 = vadd.f32 %v1290, %v1332
        %v1334 = vand.u32 %v891, 4294901760
        %v1335 = vsub.f32 %v891, %v1334
        %1336 = vmatmul.f32.gmra.mxu0 %v1335
        %v1337 = vpop.f32.mrf.mxu0
        %v1338 = vadd.f32 %v1294, %v1337
        %v1339 = vand.u32 %v894, 4294901760
        %v1340 = vsub.f32 %v894, %v1339
        %1341 = vmatmul.f32.gmra.mxu0 %v1340
        %v1342 = vpop.f32.mrf.mxu0
        %v1343 = vadd.f32 %v1298, %v1342
        %v1344 = vand.u32 %v897, 4294901760
        %v1345 = vsub.f32 %v897, %v1344
        %1346 = vmatmul.f32.gmra.mxu0 %v1345
        %v1347 = vpop.f32.mrf.mxu0
        %v1348 = vadd.f32 %v1302, %v1347
        %v1349 = vand.u32 %v900, 4294901760
        %v1350 = vsub.f32 %v900, %v1349
        %1351 = vmatmul.f32.gmra.mxu0 %v1350
        %v1352 = vpop.f32.mrf.mxu0
        %v1353 = vadd.f32 %v1306, %v1352
        %1354 = vdwg.mxu0
        %1355 = vmatpush.msra.mxu0 0.0
        %1356 = vmatpush.msra.mxu0 0.0
        %1357 = vmatpush.msra.mxu0 0.0
        %1358 = vmatpush.msra.mxu0 0.0
        %1359 = vmatpush.msra.mxu0 0.0
        %1360 = vmatpush.msra.mxu0 0.0
        %1361 = vmatpush.msra.mxu0 0.0
        %1362 = vmatpush.msra.mxu0 0.0
        %1363 = vmatpush.msra.mxu0 0.0
        %1364 = vmatpush.msra.mxu0 0.0
        %1365 = vmatpush.msra.mxu0 0.0
        %1366 = vmatpush.msra.mxu0 %v276
        %1367 = vmatpush.msra.mxu0 %v274
        %1368 = vmatpush.msra.mxu0 %v272
        %1369 = vmatpush.msra.mxu0 %v270
        %1370 = vmatpush.msra.mxu0 %v268
        %v1371 = vand.u32 %v888, 4294901760
        %v1372 = vsub.f32 %v888, %v1371
        %v1373 = vand.u32 %v1372, 4294901760
        %1374 = vmatmul.f32.gmra.mxu0 %v1373
        %v1375 = vpop.f32.mrf.mxu0
        %v1376 = vadd.f32 %v1333, %v1375
        %v1377 = vand.u32 %v891, 4294901760
        %v1378 = vsub.f32 %v891, %v1377
        %v1379 = vand.u32 %v1378, 4294901760
        %1380 = vmatmul.f32.gmra.mxu0 %v1379
        %v1381 = vpop.f32.mrf.mxu0
        %v1382 = vadd.f32 %v1338, %v1381
        %v1383 = vand.u32 %v894, 4294901760
        %v1384 = vsub.f32 %v894, %v1383
        %v1385 = vand.u32 %v1384, 4294901760
        %1386 = vmatmul.f32.gmra.mxu0 %v1385
        %v1387 = vpop.f32.mrf.mxu0
        %v1388 = vadd.f32 %v1343, %v1387
        %v1389 = vand.u32 %v897, 4294901760
        %v1390 = vsub.f32 %v897, %v1389
        %v1391 = vand.u32 %v1390, 4294901760
        %1392 = vmatmul.f32.gmra.mxu0 %v1391
        %v1393 = vpop.f32.mrf.mxu0
        %v1394 = vadd.f32 %v1348, %v1393
        %v1395 = vand.u32 %v900, 4294901760
        %v1396 = vsub.f32 %v900, %v1395
        %v1397 = vand.u32 %v1396, 4294901760
        %1398 = vmatmul.f32.gmra.mxu0 %v1397
        %v1399 = vpop.f32.mrf.mxu0
        %v1400 = vadd.f32 %v1353, %v1399
        %1401 = vdwg.mxu0
        %1402 = vmatpush.msra.mxu0 0.0
        %1403 = vmatpush.msra.mxu0 0.0
        %1404 = vmatpush.msra.mxu0 0.0
        %1405 = vmatpush.msra.mxu0 0.0
        %1406 = vmatpush.msra.mxu0 0.0
        %1407 = vmatpush.msra.mxu0 0.0
        %1408 = vmatpush.msra.mxu0 0.0
        %1409 = vmatpush.msra.mxu0 0.0
        %1410 = vmatpush.msra.mxu0 0.0
        %1411 = vmatpush.msra.mxu0 0.0
        %1412 = vmatpush.msra.mxu0 0.0
        %v1413 = vsub.f32 %v276, %v276
        %v1414 = vand.u32 %v1413, 4294901760
        %1415 = vmatpush.msra.mxu0 %v1414
        %v1416 = vsub.f32 %v274, %v274
        %v1417 = vand.u32 %v1416, 4294901760
        %1418 = vmatpush.msra.mxu0 %v1417
        %v1419 = vsub.f32 %v272, %v272
        %v1420 = vand.u32 %v1419, 4294901760
        %1421 = vmatpush.msra.mxu0 %v1420
        %v1422 = vsub.f32 %v270, %v270
        %v1423 = vand.u32 %v1422, 4294901760
        %1424 = vmatpush.msra.mxu0 %v1423
        %v1425 = vsub.f32 %v268, %v268
        %v1426 = vand.u32 %v1425, 4294901760
        %1427 = vmatpush.msra.mxu0 %v1426
        %v1428 = vand.u32 %v888, 4294901760
        %1429 = vmatmul.f32.gmra.mxu0 %v1428
        %v1430 = vpop.f32.mrf.mxu0
        %v1431 = vadd.f32 %v1376, %v1430
        %v1432 = vand.u32 %v891, 4294901760
        %1433 = vmatmul.f32.gmra.mxu0 %v1432
        %v1434 = vpop.f32.mrf.mxu0
        %v1435 = vadd.f32 %v1382, %v1434
        %v1436 = vand.u32 %v894, 4294901760
        %1437 = vmatmul.f32.gmra.mxu0 %v1436
        %v1438 = vpop.f32.mrf.mxu0
        %v1439 = vadd.f32 %v1388, %v1438
        %v1440 = vand.u32 %v897, 4294901760
        %1441 = vmatmul.f32.gmra.mxu0 %v1440
        %v1442 = vpop.f32.mrf.mxu0
        %v1443 = vadd.f32 %v1394, %v1442
        %v1444 = vand.u32 %v900, 4294901760
        %1445 = vmatmul.f32.gmra.mxu0 %v1444
        %v1446 = vpop.f32.mrf.mxu0
        %v1447 = vadd.f32 %v1400, %v1446
        %1448 = vdwg.mxu0
        %1449 = vmatpush.msra.mxu0 0.0
        %1450 = vmatpush.msra.mxu0 0.0
        %1451 = vmatpush.msra.mxu0 0.0
        %1452 = vmatpush.msra.mxu0 0.0
        %1453 = vmatpush.msra.mxu0 0.0
        %1454 = vmatpush.msra.mxu0 0.0
        %1455 = vmatpush.msra.mxu0 0.0
        %1456 = vmatpush.msra.mxu0 0.0
        %1457 = vmatpush.msra.mxu0 0.0
        %1458 = vmatpush.msra.mxu0 0.0
        %1459 = vmatpush.msra.mxu0 0.0
        %1460 = vmatpush.msra.mxu0 %v276
        %1461 = vmatpush.msra.mxu0 %v274
        %1462 = vmatpush.msra.mxu0 %v272
        %1463 = vmatpush.msra.mxu0 %v270
        %1464 = vmatpush.msra.mxu0 %v268
        %v1465 = vand.u32 %v888, 4294901760
        %1466 = vmatmul.f32.gmra.mxu0 %v1465
        %v1467 = vpop.f32.mrf.mxu0
        %v1468 = vadd.f32 %v1431, %v1467
        %v1469 = vand.u32 %v891, 4294901760
        %1470 = vmatmul.f32.gmra.mxu0 %v1469
        %v1471 = vpop.f32.mrf.mxu0
        %v1472 = vadd.f32 %v1435, %v1471
        %v1473 = vand.u32 %v894, 4294901760
        %1474 = vmatmul.f32.gmra.mxu0 %v1473
        %v1475 = vpop.f32.mrf.mxu0
        %v1476 = vadd.f32 %v1439, %v1475
        %v1477 = vand.u32 %v897, 4294901760
        %1478 = vmatmul.f32.gmra.mxu0 %v1477
        %v1479 = vpop.f32.mrf.mxu0
        %v1480 = vadd.f32 %v1443, %v1479
        %v1481 = vand.u32 %v900, 4294901760
        %1482 = vmatmul.f32.gmra.mxu0 %v1481
        %v1483 = vpop.f32.mrf.mxu0
        %v1484 = vadd.f32 %v1447, %v1483
        %1485 = vdwg.mxu0
        %v1486 = vmul.f32 %v572, %v1176
        %v1487 = vmul.f32 %v864, %v1468
        %v1488 = vmul.f32 %v576, %v1180
        %v1489 = vmul.f32 %v868, %v1472
        %v1490 = vmul.f32 %v580, %v1184
        %v1491 = vmul.f32 %v872, %v1476
        %v1492 = vmul.f32 %v584, %v1188
        %v1493 = vmul.f32 %v876, %v1480
        %v1494 = vmul.f32 %v588, %v1192
        %v1495 = vmul.f32 %v880, %v1484
        %v1496 = vadd.f32 %v1486, %v1488
        %v1497 = vadd.f32 %v1496, %v1490
        %v1498 = vadd.f32 %v1497, %v1492
        %v1499 = vadd.f32 %v1498, %v1494
        %v1500 = vrot.slane %v1499, 4
        %v1501 = vadd.f32 %v1499, %v1500
        %v1502 = vrot.slane %v1501, 2
        %v1503 = vadd.f32 %v1501, %v1502
        %v1504 = vrot.slane %v1503, 1
        %v1505 = vadd.f32 %v1503, %v1504
        %v1506 = vadd.f32 %v1487, %v1489
        %v1507 = vadd.f32 %v1506, %v1491
        %v1508 = vadd.f32 %v1507, %v1493
        %v1509 = vadd.f32 %v1508, %v1495
        %v1510 = vrot.slane %v1509, 4
        %v1511 = vadd.f32 %v1509, %v1510
        %v1512 = vrot.slane %v1511, 2
        %v1513 = vadd.f32 %v1511, %v1512
        %v1514 = vrot.slane %v1513, 1
        %v1515 = vadd.f32 %v1513, %v1514
        %v1518 = vrot.slane %v1515, 7
        %vm1519 = vcmask 1040384
        %v1520 = vsel %vm1519, %v1505, %v1518
        %v1522 = vlaneseq
        %vm1523 = vcmp.ge.s32.totalorder %v1522, 0
        %vm1524 = vcmp.lt.s32.totalorder %v1522, 256
        %vm1525 = vmand %vm1523, %vm1524
        %1526 = vst.msk [vmem:[%s221] sm:$0x3] %vm1525, %v1520
        %s1527 = sand.u32 %s97, 1
        %s1528 = scalar_lea.sflag [#allocation4], %s1527
        %s1529 = sand.u32 %s97, 1
        %s1530 = smul.addr %s1529, 2
        %s1531 = scalar_lea.vmem [#allocation8], %s1530
        // Predicated region
        $region45: #{tpu_custom_call.1} parent=31 // pred_check
          %p1532 = pneg %p107
        $region46: #{tpu_custom_call.1} parent=31 // pred_check_branch
          %1534 = sbr.rel (%p1532) target = $region48
        $region47: #{tpu_custom_call.1} parent=31 // pred_region
          %s1535 = smul.u32 2, %s21
          %1537 = vsyncadd %s1528, 0
          %s1538 = scalar_lea.hbm %s3, %s1535
          %s1540 = sshll.u32 %s1531, 4
          %s1541 = int_to_ptr.vmem [resolvable:$true] %s1540
          %s1542 = sshll.u32 %s1538, 4
          %s1543 = int_to_ptr.hbm [resolvable:$true] %s1542
          %1545 = dma.vmem_to_hbm [thread:$0]  %s1541, 32, %s1543, %s1528
        $region48: #{tpu_custom_call.1} parent=31 // pred_fallthru
          _
      $region32: #{tpu_custom_call.1} parent=5 // pred_fallthru
        _
      %p1546 = scmp.le.s32.totalorder 2, %s16
      // Predicated region
      $region49: #{tpu_custom_call.1} parent=5 // pred_check
        %p1547 = pneg %p1546
      $region50: #{tpu_custom_call.1} parent=5 // pred_check_branch
        %1549 = sbr.rel (%p1547) target = $region52
      $region51: #{tpu_custom_call.1} parent=5 // pred_region
        %s1550 = ssub.s32 %s16, 2
        // Predicated region
        $region53: #{tpu_custom_call.1} parent=51 // pred_check
          %p1551 = pneg %p113
        $region54: #{tpu_custom_call.1} parent=51 // pred_check_branch
          %1553 = sbr.rel (%p1551) target = $region56
        $region55: #{tpu_custom_call.1} parent=51 // pred_region
          %s1554 = sand.u32 %s98, 1
          %s1555 = scalar_lea.sflag [#allocation4], %s1554
          %s1556 = sand.u32 %s98, 1
          %s1557 = smul.addr %s1556, 2
          %s1558 = scalar_lea.vmem [#allocation8], %s1557
          %1560 = dma.done %s1555, 32
        $region56: #{tpu_custom_call.1} parent=51 // pred_fallthru
          _
      $region52: #{tpu_custom_call.1} parent=5 // pred_fallthru
        _
    $region6: #{tpu_custom_call.1} parent=1 // loop_footer
      %s20 = sadd.s32 1, %s16
    $region7: #{tpu_custom_call.1} parent=1 // loop_footer_branch
      %15 = sbr.rel target = $region3
    $region8: #{tpu_custom_call.1} parent=1 // loop_exit
      _
    %1561 = vsyncpa [#allocation3], 1
    %s1562 = scalar_lea.sflag [#allocation3], 1
    %1563 = vsyncpa %s1562, 1
    %1564 = vsyncpa [#allocation6], 1
    %1565 = vsyncpa [#allocation4], 1
    %s1566 = scalar_lea.sflag [#allocation4], 1
    %1567 = vsyncpa %s1566, 1

</llo_original>
